<compile_context>
chip_gen: v5e
topology: v5e:2x2
jax: 0.10.0
libtpu: 0.0.40
codegen_flags: <defaults>
</compile_context>

<pallas_src>
import functools
import numpy as np

import jax
import jax.numpy as jnp
from jax import lax
from jax.experimental import pallas as pl
from jax.experimental.pallas import tpu as pltpu


# Matmul input dtype for the MXU (f32 accumulation everywhere).
# jnp.float32 gives bit-closer parity with the f32 PyTorch reference.
MXU_DTYPE = jnp.bfloat16


# -----------------------------------------------------------------------------
# Pallas kernel: one SwinTransformerBlock applied to a batch of Wb windows.
# -----------------------------------------------------------------------------
def make_swin_kernel(*, num_heads, win_per_img):
    def kernel(xw_ref, bm_ref,
               ln1g, ln1b, qkvw, qkvb, pw, pb,
               ln2g, ln2b, f1w, f1b, f2w, f2b, out_ref):
        Wb, n, C = xw_ref.shape          # e.g. (4, 16, 32)
        nh = num_heads
        hd = C // nh
        M = Wb * n                       # flattened token count
        bb = Wb // win_per_img           # images per grid step
        G = nh * Wb                      # head*window batch

        # (Wb, n, C) -> (M, C): leading-dim merge only (lane dim unchanged).
        x = xw_ref[...].reshape(M, C)    # f32, also the residual shortcut

        def layernorm(v, g_ref, b_ref):
            mu = jnp.mean(v, axis=-1, keepdims=True)
            var = jnp.mean((v - mu) ** 2, axis=-1, keepdims=True)
            return (v - mu) * lax.rsqrt(var + 1e-5) * g_ref[...] + b_ref[...]

        def mm(a, w_ref):                # bf16 MXU inputs, f32 accumulate
            return jnp.dot(a.astype(MXU_DTYPE), w_ref[...],
                           preferred_element_type=jnp.float32)

        # ---- attention branch -------------------------------------------------
        xn = layernorm(x, ln1g, ln1b)
        # fused QKV: one N=3C matmul; qk scale already folded into q weight/bias.
        qkv = (mm(xn, qkvw) + qkvb[...]).astype(MXU_DTYPE)      # (M, 3C), bf16 once

        def head_major(col0):
            # (M, 3C) columns -> (nh*Wb, n, hd) with g = h*Wb + b (axis-0 stack).
            parts = [qkv[:, col0 + h * hd: col0 + (h + 1) * hd].reshape(Wb, n, hd)
                     for h in range(nh)]
            return jnp.concatenate(parts, axis=0)

        qh = head_major(0)               # (G, n, hd)
        kh = head_major(C)
        vh = head_major(2 * C)

        # single head*window-batched score contraction
        s = jnp.einsum('gnd,gmd->gnm', qh, kh,
                       preferred_element_type=jnp.float32)       # (G, n, n)
        # one add of the pre-combined relative-position bias + shift mask
        s = (s.reshape(nh, bb, win_per_img, n, n)
             + bm_ref[...][:, None]).reshape(G, n, n)

        s = s - jnp.max(s, axis=-1, keepdims=True)
        p_att = jnp.exp(s)
        p_att = p_att * pl.reciprocal(jnp.sum(p_att, axis=-1, keepdims=True),
                                      approx=True)

        o = jnp.einsum('gnm,gmd->gnd', p_att.astype(MXU_DTYPE), vh,
                       preferred_element_type=jnp.float32)       # (G, n, hd)

        # head-major -> (M, C): one lane-concat, then a single (M,C)@(C,C) proj.
        o = o.reshape(nh, M, hd)
        o_cat = jnp.concatenate([o[h] for h in range(nh)], axis=-1)   # (M, C)
        attn = mm(o_cat, pw) + pb[...]

        x1 = x + attn                    # residual 1 (drop_path = identity, eval)

        # ---- MLP branch ---------------------------------------------------------
        xn2 = layernorm(x1, ln2g, ln2b)
        hmid = mm(xn2, f1w) + f1b[...]
        hmid = jax.nn.gelu(hmid, approximate=True)   # tanh form -> EUP slot
        x2 = x1 + mm(hmid, f2w) + f2b[...]           # residual 2

        out_ref[...] = x2.reshape(Wb, n, C)

    return kernel


# -----------------------------------------------------------------------------
# pallas_call wrapper: grid over blocks of Wb windows.
# -----------------------------------------------------------------------------
def run_block_windows(xw, bias_mask, p, *, win_per_img, imgs_per_block, num_heads):
    TW, n, C = xw.shape
    Wb = imgs_per_block * win_per_img
    assert TW % Wb == 0, "window blocks must align to whole images"
    grid = (TW // Wb,)
    hd = C // num_heads
    scale = hd ** (-0.5)
    hidden = p["fc1_w"].shape[1]

    # Fuse Q/K/V into one (C, 3C) weight; fold the qk scale into the q slice.
    qkv_w = jnp.concatenate([p["q_w"] * scale, p["kv_w"]], axis=1).astype(MXU_DTYPE)
    qkv_b = jnp.concatenate([p["q_b"] * scale, p["kv_b"]], axis=1)   # (1, 3C) f32

    weights = [
        p["ln1_g"], p["ln1_b"],
        qkv_w, qkv_b,
        p["proj_w"].astype(MXU_DTYPE), p["proj_b"],
        p["ln2_g"], p["ln2_b"],
        p["fc1_w"].astype(MXU_DTYPE), p["fc1_b"],
        p["fc2_w"].astype(MXU_DTYPE), p["fc2_b"],
    ]

    kernel = make_swin_kernel(num_heads=num_heads, win_per_img=win_per_img)

    def full_spec(a):
        nd = a.ndim
        return pl.BlockSpec(a.shape, lambda i, _nd=nd: (0,) * _nd)

    in_specs = [pl.BlockSpec((Wb, n, C), lambda i: (i, 0, 0)),   # window-batched tokens
                full_spec(bias_mask)]                            # (heads, nW, n, n)
    inputs = [xw, bias_mask]
    in_specs += [full_spec(w) for w in weights]
    inputs += weights

    # Advisory cost estimate (whole call) so XLA schedules surrounding permutes.
    M_total = TW * n
    flops = (2 * M_total * C * 3 * C                       # fused QKV
             + 4 * TW * num_heads * n * n * hd             # scores + attn@v
             + 2 * M_total * C * C                         # projection
             + 4 * M_total * C * hidden)                   # MLP
    transcendentals = TW * num_heads * n * n + M_total * hidden + 2 * M_total
    bytes_accessed = (2 * M_total * C * 4                  # x in/out (f32)
                      + int(bias_mask.size) * 4
                      + (C * 3 * C + C * C + 2 * C * hidden) * 2
                      + (3 * C + 3 * C + 2 * hidden) * 4)
    cost = pl.CostEstimate(flops=flops, transcendentals=transcendentals,
                           bytes_accessed=bytes_accessed)

    return pl.pallas_call(
        kernel,
        out_shape=jax.ShapeDtypeStruct((TW, n, C), jnp.float32),
        grid=grid,
        in_specs=in_specs,
        out_specs=pl.BlockSpec((Wb, n, C), lambda i: (i, 0, 0)),
        compiler_params=pltpu.CompilerParams(
            dimension_semantics=("parallel",)),
        cost_estimate=cost,
    )(*inputs)


# -----------------------------------------------------------------------------
# Plain-JAX / numpy glue (all hoisted / jitted)
# -----------------------------------------------------------------------------
def window_partition(x, ws):
    B, H, W, C = x.shape
    x = x.reshape(B, H // ws, ws, W // ws, ws, C)
    return x.transpose(0, 1, 3, 2, 4, 5).reshape(-1, ws * ws, C)


def window_reverse(w, ws, H, W, B, C):
    x = w.reshape(B, H // ws, W // ws, ws, ws, C)
    return x.transpose(0, 1, 3, 2, 4, 5).reshape(B, H, W, C)


def make_relative_position_index(ws):
    coords = np.stack(np.meshgrid(np.arange(ws), np.arange(ws), indexing="ij"))
    cf = coords.reshape(2, -1)
    rel = (cf[:, :, None] - cf[:, None, :]).transpose(1, 2, 0).astype(np.int64)
    rel[:, :, 0] += ws - 1
    rel[:, :, 1] += ws - 1
    rel[:, :, 0] *= 2 * ws - 1
    return rel.sum(-1).astype(np.int32)           # (n, n)


def calculate_mask(H, W, ws, ss):
    img = np.zeros((1, H, W, 1), dtype=np.float32)
    slices = (slice(0, -ws), slice(-ws, -ss), slice(-ss, None))
    cnt = 0
    for hs in slices:
        for wsl in slices:
            img[:, hs, wsl, :] = cnt
            cnt += 1
    mw = img.reshape(1, H // ws, ws, W // ws, ws, 1)
    mw = mw.transpose(0, 1, 3, 2, 4, 5).reshape(-1, ws * ws)
    am = mw[:, None, :] - mw[:, :, None]
    return np.where(am != 0, np.float32(-100.0), np.float32(0.0))   # (nW, n, n)


def init_block_params(key, dim, num_heads, ws, hidden):
    ks = jax.random.split(key, 6)
    f32 = jnp.float32
    return dict(
        ln1_g=jnp.ones((1, dim), f32), ln1_b=jnp.zeros((1, dim), f32),
        q_w=(0.02 * jax.random.normal(ks[0], (dim, dim))).astype(f32),
        q_b=jnp.zeros((1, dim), f32),
        kv_w=(0.02 * jax.random.normal(ks[1], (dim, 2 * dim))).astype(f32),
        kv_b=jnp.zeros((1, 2 * dim), f32),
        proj_w=(0.02 * jax.random.normal(ks[2], (dim, dim))).astype(f32),
        proj_b=jnp.zeros((1, dim), f32),
        ln2_g=jnp.ones((1, dim), f32), ln2_b=jnp.zeros((1, dim), f32),
        fc1_w=(0.02 * jax.random.normal(ks[3], (dim, hidden))).astype(f32),
        fc1_b=jnp.zeros((1, hidden), f32),
        fc2_w=(0.02 * jax.random.normal(ks[4], (hidden, dim))).astype(f32),
        fc2_b=jnp.zeros((1, dim), f32),
        rel_table=(0.02 * jax.random.normal(
            ks[5], ((2 * ws - 1) ** 2, num_heads))).astype(f32),
    )


def swin_block_forward(x, p, rel_index, attn_mask, *, x_size, ws, shift,
                       num_heads, imgs_per_block):
    H, W = x_size
    B, L, C = x.shape
    n = ws * ws
    nW = (H // ws) * (W // ws)

    xg = x.reshape(B, H, W, C)
    if shift > 0:
        xg = jnp.roll(xg, shift=(-shift, -shift), axis=(1, 2))
    xw = window_partition(xg, ws)                                   # (B*nW, n, C)

    # relative-position bias gather (once per block, outside the kernel),
    # pre-combined with the shift mask into a single additive tensor.
    bias = p["rel_table"][rel_index.reshape(-1)]
    bias = bias.reshape(n, n, num_heads).transpose(2, 0, 1).astype(jnp.float32)
    if shift > 0:
        bias_mask = bias[:, None, :, :] + attn_mask[None, :, :, :]  # (H, nW, n, n)
    else:
        bias_mask = jnp.broadcast_to(bias[:, None, :, :], (num_heads, nW, n, n))

    out_w = run_block_windows(xw, bias_mask, p, win_per_img=nW,
                              imgs_per_block=imgs_per_block, num_heads=num_heads)

    xg2 = window_reverse(out_w, ws, H, W, B, C)
    if shift > 0:
        xg2 = jnp.roll(xg2, shift=(shift, shift), axis=(1, 2))
    return xg2.reshape(B, L, C)


def basic_layer_forward(x, block_params, rel_index, attn_mask, *,
                        x_size, window_size, num_heads, imgs_per_block):
    # alternating shift 0 / ws//2; eval mode (dropout / drop_path are identity)
    for i, p in enumerate(block_params):
        shift = 0 if i % 2 == 0 else window_size // 2
        x = swin_block_forward(x, p, rel_index, attn_mask,
                               x_size=x_size, ws=window_size, shift=shift,
                               num_heads=num_heads, imgs_per_block=imgs_per_block)
    return x


def choose_imgs_per_block(B, nW, n, max_rows=2048, min_grid=2):
    """Largest Bb dividing B with Bb*nW*n rows <= max_rows, preferring a grid
    of at least `min_grid` steps (keeps both v7x TensorCores busy)."""
    candidates = [bb for bb in range(1, B + 1)
                  if B % bb == 0 and bb * nW * n <= max_rows]
    if not candidates:
        return 1
    preferred = [bb for bb in candidates if B // bb >= min_grid]
    return max(preferred) if preferred else max(candidates)


# -----------------------------------------------------------------------------
if __name__ == "__main__":
    # Config: dim=32, input_resolution=(8, 8), depth=2, num_heads=4,
    # window_size=4, mlp_ratio=2.0
    dim = 32
    H, W = 8, 8
    depth = 2
    num_heads = 4
    window_size = 4
    mlp_hidden = int(dim * 2.0)
    B = 2

    key = jax.random.PRNGKey(0)
    kx, *bkeys = jax.random.split(key, depth + 1)

    x = jax.random.normal(kx, (B, H * W, dim), dtype=jnp.float32)
    block_params = [init_block_params(bk, dim, num_heads, window_size, mlp_hidden)
                    for bk in bkeys]

    nW = (H // window_size) * (W // window_size)
    n = window_size * window_size
    imgs_per_block = choose_imgs_per_block(B, nW, n)    # -> 1 (grid of 2 steps)

    # hoisted constants (computed once)
    rel_index = jnp.asarray(make_relative_position_index(window_size))
    attn_mask = jnp.asarray(calculate_mask(H, W, window_size, window_size // 2))

    fwd = jax.jit(functools.partial(
        basic_layer_forward,
        x_size=(H, W), window_size=window_size,
        num_heads=num_heads, imgs_per_block=imgs_per_block))

    out = fwd(x, block_params, rel_index, attn_mask)
    out = jax.block_until_ready(out)

    assert out.shape == (B, H * W, dim)
    assert bool(jnp.all(jnp.isfinite(out)))
    print("KERNEL_OK")
</pallas_src>

<mosaic_0001>
module attributes {stable_mosaic.version = 11 : i64} {
  func.func @kernel(%arg0: i32, %arg1: memref<4x16x32xf32, #tpu.memory_space<vmem>>, %arg2: memref<4x4x16x16xf32, #tpu.memory_space<vmem>>, %arg3: memref<1x32xf32, #tpu.memory_space<vmem>>, %arg4: memref<1x32xf32, #tpu.memory_space<vmem>>, %arg5: memref<32x96xbf16, #tpu.memory_space<vmem>>, %arg6: memref<1x96xf32, #tpu.memory_space<vmem>>, %arg7: memref<32x32xbf16, #tpu.memory_space<vmem>>, %arg8: memref<1x32xf32, #tpu.memory_space<vmem>>, %arg9: memref<1x32xf32, #tpu.memory_space<vmem>>, %arg10: memref<1x32xf32, #tpu.memory_space<vmem>>, %arg11: memref<32x64xbf16, #tpu.memory_space<vmem>>, %arg12: memref<1x64xf32, #tpu.memory_space<vmem>>, %arg13: memref<64x32xbf16, #tpu.memory_space<vmem>>, %arg14: memref<1x32xf32, #tpu.memory_space<vmem>>, %arg15: memref<4x16x32xf32, #tpu.memory_space<vmem>>) attributes {dimension_semantics = [#tpu.dimension_semantics<parallel>], iteration_bounds = array<i64: 2>, scalar_prefetch = 0 : i64, scratch_operands = 0 : i64, tpu.core_type = #tpu.core_type<tc>, window_params = [{transform_indices = @transform_0, window_bounds = array<i64: 4, 16, 32>}, {pipeline_mode = #tpu.pipeline_mode<synchronous>, transform_indices = @transform_1, window_bounds = array<i64: 4, 4, 16, 16>}, {pipeline_mode = #tpu.pipeline_mode<synchronous>, transform_indices = @transform_2, window_bounds = array<i64: 1, 32>}, {pipeline_mode = #tpu.pipeline_mode<synchronous>, transform_indices = @transform_3, window_bounds = array<i64: 1, 32>}, {pipeline_mode = #tpu.pipeline_mode<synchronous>, transform_indices = @transform_4, window_bounds = array<i64: 32, 96>}, {pipeline_mode = #tpu.pipeline_mode<synchronous>, transform_indices = @transform_5, window_bounds = array<i64: 1, 96>}, {pipeline_mode = #tpu.pipeline_mode<synchronous>, transform_indices = @transform_6, window_bounds = array<i64: 32, 32>}, {pipeline_mode = #tpu.pipeline_mode<synchronous>, transform_indices = @transform_7, window_bounds = array<i64: 1, 32>}, {pipeline_mode = #tpu.pipeline_mode<synchronous>, transform_indices = @transform_8, window_bounds = array<i64: 1, 32>}, {pipeline_mode = #tpu.pipeline_mode<synchronous>, transform_indices = @transform_9, window_bounds = array<i64: 1, 32>}, {pipeline_mode = #tpu.pipeline_mode<synchronous>, transform_indices = @transform_10, window_bounds = array<i64: 32, 64>}, {pipeline_mode = #tpu.pipeline_mode<synchronous>, transform_indices = @transform_11, window_bounds = array<i64: 1, 64>}, {pipeline_mode = #tpu.pipeline_mode<synchronous>, transform_indices = @transform_12, window_bounds = array<i64: 64, 32>}, {pipeline_mode = #tpu.pipeline_mode<synchronous>, transform_indices = @transform_13, window_bounds = array<i64: 1, 32>}, {transform_indices = @transform_14, window_bounds = array<i64: 4, 16, 32>}]} {
    %c0 = arith.constant 0 : index
    %c0_0 = arith.constant 0 : index
    %c0_1 = arith.constant 0 : index
    %0 = vector.load %arg1[%c0, %c0_0, %c0_1] : memref<4x16x32xf32, #tpu.memory_space<vmem>>, vector<4x16x32xf32>
    %1 = vector.shape_cast %0 : vector<4x16x32xf32> to vector<64x32xf32>
    %cst = arith.constant dense<0.000000e+00> : vector<64xf32>
    %2 = vector.multi_reduction <add>, %1, %cst [1] : vector<64x32xf32> to vector<64xf32>
    %3 = vector.shape_cast %2 : vector<64xf32> to vector<64x1xf32>
    %cst_2 = arith.constant 3.200000e+01 : f32
    %4 = vector.broadcast %cst_2 : f32 to vector<64x1xf32>
    %5 = arith.divf %3, %4 : vector<64x1xf32>
    %6 = vector.broadcast %5 : vector<64x1xf32> to vector<64x32xf32>
    %7 = arith.subf %1, %6 : vector<64x32xf32>
    %8 = arith.mulf %7, %7 : vector<64x32xf32>
    %cst_3 = arith.constant dense<0.000000e+00> : vector<64xf32>
    %9 = vector.multi_reduction <add>, %8, %cst_3 [1] : vector<64x32xf32> to vector<64xf32>
    %10 = vector.shape_cast %9 : vector<64xf32> to vector<64x1xf32>
    %cst_4 = arith.constant 3.200000e+01 : f32
    %11 = vector.broadcast %cst_4 : f32 to vector<64x1xf32>
    %12 = arith.divf %10, %11 : vector<64x1xf32>
    %13 = vector.broadcast %5 : vector<64x1xf32> to vector<64x32xf32>
    %14 = arith.subf %1, %13 : vector<64x32xf32>
    %cst_5 = arith.constant 9.99999974E-6 : f32
    %15 = vector.broadcast %cst_5 : f32 to vector<64x1xf32>
    %16 = arith.addf %12, %15 : vector<64x1xf32>
    %17 = math.rsqrt %16 : vector<64x1xf32>
    %18 = vector.broadcast %17 : vector<64x1xf32> to vector<64x32xf32>
    %19 = arith.mulf %14, %18 : vector<64x32xf32>
    %c0_6 = arith.constant 0 : index
    %c0_7 = arith.constant 0 : index
    %20 = vector.load %arg3[%c0_6, %c0_7] : memref<1x32xf32, #tpu.memory_space<vmem>>, vector<1x32xf32>
    %21 = vector.broadcast %20 : vector<1x32xf32> to vector<64x32xf32>
    %22 = arith.mulf %19, %21 : vector<64x32xf32>
    %c0_8 = arith.constant 0 : index
    %c0_9 = arith.constant 0 : index
    %23 = vector.load %arg4[%c0_8, %c0_9] : memref<1x32xf32, #tpu.memory_space<vmem>>, vector<1x32xf32>
    %24 = vector.broadcast %23 : vector<1x32xf32> to vector<64x32xf32>
    %25 = arith.addf %22, %24 : vector<64x32xf32>
    %26 = arith.truncf %25 : vector<64x32xf32> to vector<64x32xbf16>
    %c0_10 = arith.constant 0 : index
    %c0_11 = arith.constant 0 : index
    %27 = vector.load %arg5[%c0_10, %c0_11] : memref<32x96xbf16, #tpu.memory_space<vmem>>, vector<32x96xbf16>
    %cst_12 = arith.constant dense<0.000000e+00> : vector<64x96xf32>
    %28 = tpu.matmul %26, %27, %cst_12 {dimension_numbers = #tpu.dot_dimension_numbers<[1], [0], [0], [1], [0, 0, 1, 1], [], []>} : vector<64x32xbf16>, vector<32x96xbf16>, vector<64x96xf32> -> vector<64x96xf32>
    %c0_13 = arith.constant 0 : index
    %c0_14 = arith.constant 0 : index
    %29 = vector.load %arg6[%c0_13, %c0_14] : memref<1x96xf32, #tpu.memory_space<vmem>>, vector<1x96xf32>
    %30 = vector.broadcast %29 : vector<1x96xf32> to vector<64x96xf32>
    %31 = arith.addf %28, %30 : vector<64x96xf32>
    %32 = arith.truncf %31 : vector<64x96xf32> to vector<64x96xbf16>
    %33 = vector.extract_strided_slice %32 {offsets = [0, 0], sizes = [64, 8], strides = [1, 1]} : vector<64x96xbf16> to vector<64x8xbf16>
    %34 = vector.shape_cast %33 : vector<64x8xbf16> to vector<4x16x8xbf16>
    %35 = vector.extract_strided_slice %32 {offsets = [0, 8], sizes = [64, 8], strides = [1, 1]} : vector<64x96xbf16> to vector<64x8xbf16>
    %36 = vector.shape_cast %35 : vector<64x8xbf16> to vector<4x16x8xbf16>
    %37 = vector.extract_strided_slice %32 {offsets = [0, 16], sizes = [64, 8], strides = [1, 1]} : vector<64x96xbf16> to vector<64x8xbf16>
    %38 = vector.shape_cast %37 : vector<64x8xbf16> to vector<4x16x8xbf16>
    %39 = vector.extract_strided_slice %32 {offsets = [0, 24], sizes = [64, 8], strides = [1, 1]} : vector<64x96xbf16> to vector<64x8xbf16>
    %40 = vector.shape_cast %39 : vector<64x8xbf16> to vector<4x16x8xbf16>
    %41 = tpu.concatenate %34, %36, %38, %40 in 0 : vector<4x16x8xbf16>, vector<4x16x8xbf16>, vector<4x16x8xbf16>, vector<4x16x8xbf16> -> vector<16x16x8xbf16>
    %42 = vector.extract_strided_slice %32 {offsets = [0, 32], sizes = [64, 8], strides = [1, 1]} : vector<64x96xbf16> to vector<64x8xbf16>
    %43 = vector.shape_cast %42 : vector<64x8xbf16> to vector<4x16x8xbf16>
    %44 = vector.extract_strided_slice %32 {offsets = [0, 40], sizes = [64, 8], strides = [1, 1]} : vector<64x96xbf16> to vector<64x8xbf16>
    %45 = vector.shape_cast %44 : vector<64x8xbf16> to vector<4x16x8xbf16>
    %46 = vector.extract_strided_slice %32 {offsets = [0, 48], sizes = [64, 8], strides = [1, 1]} : vector<64x96xbf16> to vector<64x8xbf16>
    %47 = vector.shape_cast %46 : vector<64x8xbf16> to vector<4x16x8xbf16>
    %48 = vector.extract_strided_slice %32 {offsets = [0, 56], sizes = [64, 8], strides = [1, 1]} : vector<64x96xbf16> to vector<64x8xbf16>
    %49 = vector.shape_cast %48 : vector<64x8xbf16> to vector<4x16x8xbf16>
    %50 = tpu.concatenate %43, %45, %47, %49 in 0 : vector<4x16x8xbf16>, vector<4x16x8xbf16>, vector<4x16x8xbf16>, vector<4x16x8xbf16> -> vector<16x16x8xbf16>
    %51 = vector.extract_strided_slice %32 {offsets = [0, 64], sizes = [64, 8], strides = [1, 1]} : vector<64x96xbf16> to vector<64x8xbf16>
    %52 = vector.shape_cast %51 : vector<64x8xbf16> to vector<4x16x8xbf16>
    %53 = vector.extract_strided_slice %32 {offsets = [0, 72], sizes = [64, 8], strides = [1, 1]} : vector<64x96xbf16> to vector<64x8xbf16>
    %54 = vector.shape_cast %53 : vector<64x8xbf16> to vector<4x16x8xbf16>
    %55 = vector.extract_strided_slice %32 {offsets = [0, 80], sizes = [64, 8], strides = [1, 1]} : vector<64x96xbf16> to vector<64x8xbf16>
    %56 = vector.shape_cast %55 : vector<64x8xbf16> to vector<4x16x8xbf16>
    %57 = vector.extract_strided_slice %32 {offsets = [0, 88], sizes = [64, 8], strides = [1, 1]} : vector<64x96xbf16> to vector<64x8xbf16>
    %58 = vector.shape_cast %57 : vector<64x8xbf16> to vector<4x16x8xbf16>
    %59 = tpu.concatenate %52, %54, %56, %58 in 0 : vector<4x16x8xbf16>, vector<4x16x8xbf16>, vector<4x16x8xbf16>, vector<4x16x8xbf16> -> vector<16x16x8xbf16>
    "tpu.trace_start"() <{level = 10 : i32, message = "gnd,gmd->gnm"}> : () -> ()
    %cst_15 = arith.constant dense<0.000000e+00> : vector<16x16x16xf32>
    %60 = tpu.matmul %41, %50, %cst_15 {dimension_numbers = #tpu.dot_dimension_numbers<[2], [2], [1], [1], [0, 0, 0, 1, 1, 1], [0], [0]>} : vector<16x16x8xbf16>, vector<16x16x8xbf16>, vector<16x16x16xf32> -> vector<16x16x16xf32>
    "tpu.trace_stop"() : () -> ()
    %61 = vector.shape_cast %60 : vector<16x16x16xf32> to vector<4x1x4x16x16xf32>
    %c0_16 = arith.constant 0 : index
    %c0_17 = arith.constant 0 : index
    %c0_18 = arith.constant 0 : index
    %c0_19 = arith.constant 0 : index
    %62 = vector.load %arg2[%c0_16, %c0_17, %c0_18, %c0_19] : memref<4x4x16x16xf32, #tpu.memory_space<vmem>>, vector<4x4x16x16xf32>
    %63 = vector.shape_cast %62 : vector<4x4x16x16xf32> to vector<4x1x4x16x16xf32>
    %64 = arith.addf %61, %63 : vector<4x1x4x16x16xf32>
    %65 = vector.shape_cast %64 : vector<4x1x4x16x16xf32> to vector<16x16x16xf32>
    %cst_20 = arith.constant dense<0xFF800000> : vector<16x16xf32>
    %66 = vector.multi_reduction <maximumf>, %65, %cst_20 [2] : vector<16x16x16xf32> to vector<16x16xf32>
    %67 = vector.shape_cast %66 : vector<16x16xf32> to vector<16x16x1xf32>
    %68 = vector.broadcast %67 : vector<16x16x1xf32> to vector<16x16x16xf32>
    %69 = arith.subf %65, %68 : vector<16x16x16xf32>
    %70 = math.exp %69 : vector<16x16x16xf32>
    %cst_21 = arith.constant dense<0.000000e+00> : vector<16x16xf32>
    %71 = vector.multi_reduction <add>, %70, %cst_21 [2] : vector<16x16x16xf32> to vector<16x16xf32>
    %72 = vector.shape_cast %71 : vector<16x16xf32> to vector<16x16x1xf32>
    %73 = tpu.reciprocal %72 {approx = true} : vector<16x16x1xf32> -> vector<16x16x1xf32>
    %74 = vector.broadcast %73 : vector<16x16x1xf32> to vector<16x16x16xf32>
    %75 = arith.mulf %70, %74 : vector<16x16x16xf32>
    %76 = arith.truncf %75 : vector<16x16x16xf32> to vector<16x16x16xbf16>
    "tpu.trace_start"() <{level = 10 : i32, message = "gnm,gmd->gnd"}> : () -> ()
    %cst_22 = arith.constant dense<0.000000e+00> : vector<16x16x8xf32>
    %77 = tpu.matmul %76, %59, %cst_22 {dimension_numbers = #tpu.dot_dimension_numbers<[2], [1], [1], [2], [0, 0, 0, 1, 1, 2], [0], [0]>} : vector<16x16x16xbf16>, vector<16x16x8xbf16>, vector<16x16x8xf32> -> vector<16x16x8xf32>
    "tpu.trace_stop"() : () -> ()
    %78 = vector.shape_cast %77 : vector<16x16x8xf32> to vector<4x64x8xf32>
    %79 = vector.extract_strided_slice %78 {offsets = [0, 0, 0], sizes = [1, 64, 8], strides = [1, 1, 1]} : vector<4x64x8xf32> to vector<1x64x8xf32>
    %80 = vector.shape_cast %79 : vector<1x64x8xf32> to vector<64x8xf32>
    %81 = vector.extract_strided_slice %78 {offsets = [1, 0, 0], sizes = [1, 64, 8], strides = [1, 1, 1]} : vector<4x64x8xf32> to vector<1x64x8xf32>
    %82 = vector.shape_cast %81 : vector<1x64x8xf32> to vector<64x8xf32>
    %83 = vector.extract_strided_slice %78 {offsets = [2, 0, 0], sizes = [1, 64, 8], strides = [1, 1, 1]} : vector<4x64x8xf32> to vector<1x64x8xf32>
    %84 = vector.shape_cast %83 : vector<1x64x8xf32> to vector<64x8xf32>
    %85 = vector.extract_strided_slice %78 {offsets = [3, 0, 0], sizes = [1, 64, 8], strides = [1, 1, 1]} : vector<4x64x8xf32> to vector<1x64x8xf32>
    %86 = vector.shape_cast %85 : vector<1x64x8xf32> to vector<64x8xf32>
    %87 = tpu.concatenate %80, %82, %84, %86 in 1 : vector<64x8xf32>, vector<64x8xf32>, vector<64x8xf32>, vector<64x8xf32> -> vector<64x32xf32>
    %88 = arith.truncf %87 : vector<64x32xf32> to vector<64x32xbf16>
    %c0_23 = arith.constant 0 : index
    %c0_24 = arith.constant 0 : index
    %89 = vector.load %arg7[%c0_23, %c0_24] : memref<32x32xbf16, #tpu.memory_space<vmem>>, vector<32x32xbf16>
    %cst_25 = arith.constant dense<0.000000e+00> : vector<64x32xf32>
    %90 = tpu.matmul %88, %89, %cst_25 {dimension_numbers = #tpu.dot_dimension_numbers<[1], [0], [0], [1], [0, 0, 1, 1], [], []>} : vector<64x32xbf16>, vector<32x32xbf16>, vector<64x32xf32> -> vector<64x32xf32>
    %c0_26 = arith.constant 0 : index
    %c0_27 = arith.constant 0 : index
    %91 = vector.load %arg8[%c0_26, %c0_27] : memref<1x32xf32, #tpu.memory_space<vmem>>, vector<1x32xf32>
    %92 = vector.broadcast %91 : vector<1x32xf32> to vector<64x32xf32>
    %93 = arith.addf %90, %92 : vector<64x32xf32>
    %94 = arith.addf %1, %93 : vector<64x32xf32>
    %cst_28 = arith.constant dense<0.000000e+00> : vector<64xf32>
    %95 = vector.multi_reduction <add>, %94, %cst_28 [1] : vector<64x32xf32> to vector<64xf32>
    %96 = vector.shape_cast %95 : vector<64xf32> to vector<64x1xf32>
    %cst_29 = arith.constant 3.200000e+01 : f32
    %97 = vector.broadcast %cst_29 : f32 to vector<64x1xf32>
    %98 = arith.divf %96, %97 : vector<64x1xf32>
    %99 = vector.broadcast %98 : vector<64x1xf32> to vector<64x32xf32>
    %100 = arith.subf %94, %99 : vector<64x32xf32>
    %101 = arith.mulf %100, %100 : vector<64x32xf32>
    %cst_30 = arith.constant dense<0.000000e+00> : vector<64xf32>
    %102 = vector.multi_reduction <add>, %101, %cst_30 [1] : vector<64x32xf32> to vector<64xf32>
    %103 = vector.shape_cast %102 : vector<64xf32> to vector<64x1xf32>
    %cst_31 = arith.constant 3.200000e+01 : f32
    %104 = vector.broadcast %cst_31 : f32 to vector<64x1xf32>
    %105 = arith.divf %103, %104 : vector<64x1xf32>
    %106 = vector.broadcast %98 : vector<64x1xf32> to vector<64x32xf32>
    %107 = arith.subf %94, %106 : vector<64x32xf32>
    %cst_32 = arith.constant 9.99999974E-6 : f32
    %108 = vector.broadcast %cst_32 : f32 to vector<64x1xf32>
    %109 = arith.addf %105, %108 : vector<64x1xf32>
    %110 = math.rsqrt %109 : vector<64x1xf32>
    %111 = vector.broadcast %110 : vector<64x1xf32> to vector<64x32xf32>
    %112 = arith.mulf %107, %111 : vector<64x32xf32>
    %c0_33 = arith.constant 0 : index
    %c0_34 = arith.constant 0 : index
    %113 = vector.load %arg9[%c0_33, %c0_34] : memref<1x32xf32, #tpu.memory_space<vmem>>, vector<1x32xf32>
    %114 = vector.broadcast %113 : vector<1x32xf32> to vector<64x32xf32>
    %115 = arith.mulf %112, %114 : vector<64x32xf32>
    %c0_35 = arith.constant 0 : index
    %c0_36 = arith.constant 0 : index
    %116 = vector.load %arg10[%c0_35, %c0_36] : memref<1x32xf32, #tpu.memory_space<vmem>>, vector<1x32xf32>
    %117 = vector.broadcast %116 : vector<1x32xf32> to vector<64x32xf32>
    %118 = arith.addf %115, %117 : vector<64x32xf32>
    %119 = arith.truncf %118 : vector<64x32xf32> to vector<64x32xbf16>
    %c0_37 = arith.constant 0 : index
    %c0_38 = arith.constant 0 : index
    %120 = vector.load %arg11[%c0_37, %c0_38] : memref<32x64xbf16, #tpu.memory_space<vmem>>, vector<32x64xbf16>
    %cst_39 = arith.constant dense<0.000000e+00> : vector<64x64xf32>
    %121 = tpu.matmul %119, %120, %cst_39 {dimension_numbers = #tpu.dot_dimension_numbers<[1], [0], [0], [1], [0, 0, 1, 1], [], []>} : vector<64x32xbf16>, vector<32x64xbf16>, vector<64x64xf32> -> vector<64x64xf32>
    %c0_40 = arith.constant 0 : index
    %c0_41 = arith.constant 0 : index
    %122 = vector.load %arg12[%c0_40, %c0_41] : memref<1x64xf32, #tpu.memory_space<vmem>>, vector<1x64xf32>
    %123 = vector.broadcast %122 : vector<1x64xf32> to vector<64x64xf32>
    %124 = arith.addf %121, %123 : vector<64x64xf32>
    %125 = arith.mulf %124, %124 : vector<64x64xf32>
    %126 = arith.mulf %124, %125 : vector<64x64xf32>
    %cst_42 = arith.constant 4.471500e-02 : f32
    %127 = vector.broadcast %cst_42 : f32 to vector<64x64xf32>
    %128 = arith.mulf %127, %126 : vector<64x64xf32>
    %129 = arith.addf %124, %128 : vector<64x64xf32>
    %cst_43 = arith.constant 0.797884583 : f32
    %130 = vector.broadcast %cst_43 : f32 to vector<64x64xf32>
    %131 = arith.mulf %130, %129 : vector<64x64xf32>
    %132 = math.tanh %131 : vector<64x64xf32>
    %cst_44 = arith.constant 1.000000e+00 : f32
    %133 = vector.broadcast %cst_44 : f32 to vector<64x64xf32>
    %134 = arith.addf %133, %132 : vector<64x64xf32>
    %cst_45 = arith.constant 5.000000e-01 : f32
    %135 = vector.broadcast %cst_45 : f32 to vector<64x64xf32>
    %136 = arith.mulf %135, %134 : vector<64x64xf32>
    %137 = arith.mulf %124, %136 : vector<64x64xf32>
    %138 = arith.truncf %137 : vector<64x64xf32> to vector<64x64xbf16>
    %c0_46 = arith.constant 0 : index
    %c0_47 = arith.constant 0 : index
    %139 = vector.load %arg13[%c0_46, %c0_47] : memref<64x32xbf16, #tpu.memory_space<vmem>>, vector<64x32xbf16>
    %cst_48 = arith.constant dense<0.000000e+00> : vector<64x32xf32>
    %140 = tpu.matmul %138, %139, %cst_48 {dimension_numbers = #tpu.dot_dimension_numbers<[1], [0], [0], [1], [0, 0, 1, 1], [], []>} : vector<64x64xbf16>, vector<64x32xbf16>, vector<64x32xf32> -> vector<64x32xf32>
    %141 = arith.addf %94, %140 : vector<64x32xf32>
    %c0_49 = arith.constant 0 : index
    %c0_50 = arith.constant 0 : index
    %142 = vector.load %arg14[%c0_49, %c0_50] : memref<1x32xf32, #tpu.memory_space<vmem>>, vector<1x32xf32>
    %143 = vector.broadcast %142 : vector<1x32xf32> to vector<64x32xf32>
    %144 = arith.addf %141, %143 : vector<64x32xf32>
    %145 = vector.shape_cast %144 : vector<64x32xf32> to vector<4x16x32xf32>
    %c0_51 = arith.constant 0 : index
    %c0_52 = arith.constant 0 : index
    %c0_53 = arith.constant 0 : index
    %146 = vector.load %arg15[%c0_51, %c0_52, %c0_53] : memref<4x16x32xf32, #tpu.memory_space<vmem>>, vector<4x16x32xf32>
    tpu.vector_store %arg15[%c0_51, %c0_52, %c0_53], %145 {strides = array<i32>} : memref<4x16x32xf32, #tpu.memory_space<vmem>>, vector<4x16x32xf32>,
    return
  }
  func.func @transform_0(%arg0: i32) -> (i32, i32, i32) {
    %c0_i32 = arith.constant 0 : i32
    %c0_i32_0 = arith.constant 0 : i32
    %c0_i32_1 = arith.constant 0 : i32
    return %arg0, %c0_i32, %c0_i32_0 : i32, i32, i32
  }
  func.func @transform_1(%arg0: i32) -> (i32, i32, i32, i32) {
    %c0_i32 = arith.constant 0 : i32
    %c0_i32_0 = arith.constant 0 : i32
    %c0_i32_1 = arith.constant 0 : i32
    %c0_i32_2 = arith.constant 0 : i32
    %c0_i32_3 = arith.constant 0 : i32
    return %c0_i32, %c0_i32_0, %c0_i32_1, %c0_i32_2 : i32, i32, i32, i32
  }
  func.func @transform_2(%arg0: i32) -> (i32, i32) {
    %c0_i32 = arith.constant 0 : i32
    %c0_i32_0 = arith.constant 0 : i32
    %c0_i32_1 = arith.constant 0 : i32
    return %c0_i32, %c0_i32_0 : i32, i32
  }
  func.func @transform_3(%arg0: i32) -> (i32, i32) {
    %c0_i32 = arith.constant 0 : i32
    %c0_i32_0 = arith.constant 0 : i32
    %c0_i32_1 = arith.constant 0 : i32
    return %c0_i32, %c0_i32_0 : i32, i32
  }
  func.func @transform_4(%arg0: i32) -> (i32, i32) {
    %c0_i32 = arith.constant 0 : i32
    %c0_i32_0 = arith.constant 0 : i32
    %c0_i32_1 = arith.constant 0 : i32
    return %c0_i32, %c0_i32_0 : i32, i32
  }
  func.func @transform_5(%arg0: i32) -> (i32, i32) {
    %c0_i32 = arith.constant 0 : i32
    %c0_i32_0 = arith.constant 0 : i32
    %c0_i32_1 = arith.constant 0 : i32
    return %c0_i32, %c0_i32_0 : i32, i32
  }
  func.func @transform_6(%arg0: i32) -> (i32, i32) {
    %c0_i32 = arith.constant 0 : i32
    %c0_i32_0 = arith.constant 0 : i32
    %c0_i32_1 = arith.constant 0 : i32
    return %c0_i32, %c0_i32_0 : i32, i32
  }
  func.func @transform_7(%arg0: i32) -> (i32, i32) {
    %c0_i32 = arith.constant 0 : i32
    %c0_i32_0 = arith.constant 0 : i32
    %c0_i32_1 = arith.constant 0 : i32
    return %c0_i32, %c0_i32_0 : i32, i32
  }
  func.func @transform_8(%arg0: i32) -> (i32, i32) {
    %c0_i32 = arith.constant 0 : i32
    %c0_i32_0 = arith.constant 0 : i32
    %c0_i32_1 = arith.constant 0 : i32
    return %c0_i32, %c0_i32_0 : i32, i32
  }
  func.func @transform_9(%arg0: i32) -> (i32, i32) {
    %c0_i32 = arith.constant 0 : i32
    %c0_i32_0 = arith.constant 0 : i32
    %c0_i32_1 = arith.constant 0 : i32
    return %c0_i32, %c0_i32_0 : i32, i32
  }
  func.func @transform_10(%arg0: i32) -> (i32, i32) {
    %c0_i32 = arith.constant 0 : i32
    %c0_i32_0 = arith.constant 0 : i32
    %c0_i32_1 = arith.constant 0 : i32
    return %c0_i32, %c0_i32_0 : i32, i32
  }
  func.func @transform_11(%arg0: i32) -> (i32, i32) {
    %c0_i32 = arith.constant 0 : i32
    %c0_i32_0 = arith.constant 0 : i32
    %c0_i32_1 = arith.constant 0 : i32
    return %c0_i32, %c0_i32_0 : i32, i32
  }
  func.func @transform_12(%arg0: i32) -> (i32, i32) {
    %c0_i32 = arith.constant 0 : i32
    %c0_i32_0 = arith.constant 0 : i32
    %c0_i32_1 = arith.constant 0 : i32
    return %c0_i32, %c0_i32_0 : i32, i32
  }
  func.func @transform_13(%arg0: i32) -> (i32, i32) {
    %c0_i32 = arith.constant 0 : i32
    %c0_i32_0 = arith.constant 0 : i32
    %c0_i32_1 = arith.constant 0 : i32
    return %c0_i32, %c0_i32_0 : i32, i32
  }
  func.func @transform_14(%arg0: i32) -> (i32, i32, i32) {
    %c0_i32 = arith.constant 0 : i32
    %c0_i32_0 = arith.constant 0 : i32
    %c0_i32_1 = arith.constant 0 : i32
    return %arg0, %c0_i32, %c0_i32_0 : i32, i32, i32
  }
}

</mosaic_0001>

<llo_original>
// kernel: basic_layer_forward.2
$region0: #{basic_layer_forward.2}
  #allocation0 [shape = 'u32[]', space=smem, size = 0x4, offset = 0x4, fixed_abs, tag = 'smem constant byte address 0x4 - core index']
  #allocation1 [shape = 'u32[72,128]{1,0:T(1,128)}', space=vmem, size = 0x9000, scoped, tag = 'internal scratch']
  %s0 = inlined_call_operand.vmem [shape: f32[8,16,32], index: 0, kind: input, shape index: {}]
  %s1 = inlined_call_operand.vmem [shape: f32[4,4,16,16], index: 1, kind: input, shape index: {}]
  %s2 = inlined_call_operand.vmem [shape: f32[1,32], index: 2, kind: input, shape index: {}]
  %s3 = inlined_call_operand.vmem [shape: f32[1,32], index: 3, kind: input, shape index: {}]
  %s4 = inlined_call_operand.vmem [shape: bf16[32,96], index: 4, kind: input, shape index: {}]
  %s5 = inlined_call_operand.vmem [shape: f32[1,96], index: 5, kind: input, shape index: {}]
  %s6 = inlined_call_operand.vmem [shape: bf16[32,32], index: 6, kind: input, shape index: {}]
  %s7 = inlined_call_operand.vmem [shape: f32[1,32], index: 7, kind: input, shape index: {}]
  %s8 = inlined_call_operand.vmem [shape: f32[1,32], index: 8, kind: input, shape index: {}]
  %s9 = inlined_call_operand.vmem [shape: f32[1,32], index: 9, kind: input, shape index: {}]
  %s10 = inlined_call_operand.vmem [shape: bf16[32,64], index: 10, kind: input, shape index: {}]
  %s11 = inlined_call_operand.vmem [shape: f32[1,64], index: 11, kind: input, shape index: {}]
  %s12 = inlined_call_operand.vmem [shape: bf16[64,32], index: 12, kind: input, shape index: {}]
  %s13 = inlined_call_operand.vmem [shape: f32[1,32], index: 13, kind: input, shape index: {}]
  %s14 = inlined_call_operand.vmem [shape: f32[8,16,32], index: 14, kind: output, shape index: {}]
  %s15 = sld [smem:[#allocation0]]
  $region89: #{basic_layer_forward.2} parent=0
    _
  %s17 = ssub.s32 1, %s15
  %s18 = scalar_select 0, %s17, %s15
  loop: start=0, step=1, limit=4
  $region2: #{basic_layer_forward.2} parent=0 // loop_pre_header
    _
  $region3: #{basic_layer_forward.2} parent=0 // loop_header
    %s20 = sphi 0, %s24
    %p21 = scmp.ge.s32.totalorder %s20, 4
    %s30 = sphi 0, %s32
    %s33 = sphi 0, %s30
    %s34 = sphi 0, %s33
    %s50 = sphi 0, %s34
    %s54 = sphi 0, %s54
    %s56 = sphi 0, %s54
    %s57 = sphi 0, %s56
    %s71 = sphi 0, %s57
    %s75 = sphi 0, %s75
    %s77 = sphi 0, %s75
    %s78 = sphi 0, %s77
    %s92 = sphi 0, %s78
    %s96 = sphi 0, %s96
    %s98 = sphi 0, %s96
    %s99 = sphi 0, %s98
    %s113 = sphi 0, %s99
    %s117 = sphi 0, %s117
    %s119 = sphi 0, %s117
    %s120 = sphi 0, %s119
    %s134 = sphi 0, %s120
    %s138 = sphi 0, %s138
    %s140 = sphi 0, %s138
    %s141 = sphi 0, %s140
    %s155 = sphi 0, %s141
    %s159 = sphi 0, %s159
    %s161 = sphi 0, %s159
    %s162 = sphi 0, %s161
    %s176 = sphi 0, %s162
    %s180 = sphi 0, %s180
    %s182 = sphi 0, %s180
    %s183 = sphi 0, %s182
    %s197 = sphi 0, %s183
    %s201 = sphi 0, %s201
    %s203 = sphi 0, %s201
    %s204 = sphi 0, %s203
    %s218 = sphi 0, %s204
    %s222 = sphi 0, %s222
    %s224 = sphi 0, %s222
    %s225 = sphi 0, %s224
    %s239 = sphi 0, %s225
    %s243 = sphi 0, %s243
    %s245 = sphi 0, %s243
    %s246 = sphi 0, %s245
    %s260 = sphi 0, %s246
    %s264 = sphi 0, %s264
    %s266 = sphi 0, %s264
    %s267 = sphi 0, %s266
    %s281 = sphi 0, %s267
    %s285 = sphi 0, %s285
    %s287 = sphi 0, %s285
    %s288 = sphi 0, %s287
    %s302 = sphi 0, %s288
    %s306 = sphi 0, %s306
    %s308 = sphi 0, %s306
    %s309 = sphi 0, %s308
    %s323 = sphi 0, %s309
    %s329 = sphi 0, %s331
    %s332 = sphi 0, %s329
    %s333 = sphi 0, %s332
    %s349 = sphi 0, %s333
  $region4: #{basic_layer_forward.2} parent=0 // loop_header_branch
    %23 = sbr.rel (%p21) target = $region8
  $region5: #{basic_layer_forward.2} parent=0 // loop_body
    %s25 = ssub.s32 %s20, 1
    %s26 = ssub.s32 %s20, 2
    %s27 = sadd.s32 %s20, 1
    %s28 = ssub.s32 %s20, %s27
    %p29 = scmp.eq.s32.totalorder %s28, 0
    %s31 = sadd.s32 %s30, 1
    %s32 = scalar_select %p29, %s30, %s31
    %p35 = pneg %p29
    %p36 = scmp.eq.s32.totalorder %s20, 1
    %p37 = por %p35, %p36
    %p38 = scmp.ne.s32.totalorder %s30, %s33
    %p39 = scmp.eq.s32.totalorder %s20, 0
    %p40 = por %p38, %p39
    %p41 = scmp.ne.s32.totalorder %s30, %s33
    %p42 = scmp.eq.s32.totalorder %s25, 1
    %p43 = por %p41, %p42
    %p44 = scmp.ne.s32.totalorder %s33, %s34
    %p45 = scmp.eq.s32.totalorder %s25, 0
    %p46 = por %p44, %p45
    %p47 = scmp.ne.s32.totalorder %s33, %s34
    %p48 = scmp.eq.s32.totalorder %s26, 1
    %p49 = por %p47, %p48
    %p51 = scmp.ne.s32.totalorder %s34, %s50
    %p52 = scmp.eq.s32.totalorder %s26, 0
    %p53 = por %p51, %p52
    %s55 = sadd.s32 %s54, 1
    %p58 = scmp.eq.s32.totalorder %s20, 1
    %p59 = scmp.ne.s32.totalorder %s54, %s56
    %p60 = scmp.eq.s32.totalorder %s20, 0
    %p61 = por %p59, %p60
    %p62 = scmp.ne.s32.totalorder %s54, %s56
    %p63 = scmp.eq.s32.totalorder %s25, 1
    %p64 = por %p62, %p63
    %p65 = scmp.ne.s32.totalorder %s56, %s57
    %p66 = scmp.eq.s32.totalorder %s25, 0
    %p67 = por %p65, %p66
    %p68 = scmp.ne.s32.totalorder %s56, %s57
    %p69 = scmp.eq.s32.totalorder %s26, 1
    %p70 = por %p68, %p69
    %p72 = scmp.ne.s32.totalorder %s57, %s71
    %p73 = scmp.eq.s32.totalorder %s26, 0
    %p74 = por %p72, %p73
    %s76 = sadd.s32 %s75, 1
    %p79 = scmp.eq.s32.totalorder %s20, 1
    %p80 = scmp.ne.s32.totalorder %s75, %s77
    %p81 = scmp.eq.s32.totalorder %s20, 0
    %p82 = por %p80, %p81
    %p83 = scmp.ne.s32.totalorder %s75, %s77
    %p84 = scmp.eq.s32.totalorder %s25, 1
    %p85 = por %p83, %p84
    %p86 = scmp.ne.s32.totalorder %s77, %s78
    %p87 = scmp.eq.s32.totalorder %s25, 0
    %p88 = por %p86, %p87
    %p89 = scmp.ne.s32.totalorder %s77, %s78
    %p90 = scmp.eq.s32.totalorder %s26, 1
    %p91 = por %p89, %p90
    %p93 = scmp.ne.s32.totalorder %s78, %s92
    %p94 = scmp.eq.s32.totalorder %s26, 0
    %p95 = por %p93, %p94
    %s97 = sadd.s32 %s96, 1
    %p100 = scmp.eq.s32.totalorder %s20, 1
    %p101 = scmp.ne.s32.totalorder %s96, %s98
    %p102 = scmp.eq.s32.totalorder %s20, 0
    %p103 = por %p101, %p102
    %p104 = scmp.ne.s32.totalorder %s96, %s98
    %p105 = scmp.eq.s32.totalorder %s25, 1
    %p106 = por %p104, %p105
    %p107 = scmp.ne.s32.totalorder %s98, %s99
    %p108 = scmp.eq.s32.totalorder %s25, 0
    %p109 = por %p107, %p108
    %p110 = scmp.ne.s32.totalorder %s98, %s99
    %p111 = scmp.eq.s32.totalorder %s26, 1
    %p112 = por %p110, %p111
    %p114 = scmp.ne.s32.totalorder %s99, %s113
    %p115 = scmp.eq.s32.totalorder %s26, 0
    %p116 = por %p114, %p115
    %s118 = sadd.s32 %s117, 1
    %p121 = scmp.eq.s32.totalorder %s20, 1
    %p122 = scmp.ne.s32.totalorder %s117, %s119
    %p123 = scmp.eq.s32.totalorder %s20, 0
    %p124 = por %p122, %p123
    %p125 = scmp.ne.s32.totalorder %s117, %s119
    %p126 = scmp.eq.s32.totalorder %s25, 1
    %p127 = por %p125, %p126
    %p128 = scmp.ne.s32.totalorder %s119, %s120
    %p129 = scmp.eq.s32.totalorder %s25, 0
    %p130 = por %p128, %p129
    %p131 = scmp.ne.s32.totalorder %s119, %s120
    %p132 = scmp.eq.s32.totalorder %s26, 1
    %p133 = por %p131, %p132
    %p135 = scmp.ne.s32.totalorder %s120, %s134
    %p136 = scmp.eq.s32.totalorder %s26, 0
    %p137 = por %p135, %p136
    %s139 = sadd.s32 %s138, 1
    %p142 = scmp.eq.s32.totalorder %s20, 1
    %p143 = scmp.ne.s32.totalorder %s138, %s140
    %p144 = scmp.eq.s32.totalorder %s20, 0
    %p145 = por %p143, %p144
    %p146 = scmp.ne.s32.totalorder %s138, %s140
    %p147 = scmp.eq.s32.totalorder %s25, 1
    %p148 = por %p146, %p147
    %p149 = scmp.ne.s32.totalorder %s140, %s141
    %p150 = scmp.eq.s32.totalorder %s25, 0
    %p151 = por %p149, %p150
    %p152 = scmp.ne.s32.totalorder %s140, %s141
    %p153 = scmp.eq.s32.totalorder %s26, 1
    %p154 = por %p152, %p153
    %p156 = scmp.ne.s32.totalorder %s141, %s155
    %p157 = scmp.eq.s32.totalorder %s26, 0
    %p158 = por %p156, %p157
    %s160 = sadd.s32 %s159, 1
    %p163 = scmp.eq.s32.totalorder %s20, 1
    %p164 = scmp.ne.s32.totalorder %s159, %s161
    %p165 = scmp.eq.s32.totalorder %s20, 0
    %p166 = por %p164, %p165
    %p167 = scmp.ne.s32.totalorder %s159, %s161
    %p168 = scmp.eq.s32.totalorder %s25, 1
    %p169 = por %p167, %p168
    %p170 = scmp.ne.s32.totalorder %s161, %s162
    %p171 = scmp.eq.s32.totalorder %s25, 0
    %p172 = por %p170, %p171
    %p173 = scmp.ne.s32.totalorder %s161, %s162
    %p174 = scmp.eq.s32.totalorder %s26, 1
    %p175 = por %p173, %p174
    %p177 = scmp.ne.s32.totalorder %s162, %s176
    %p178 = scmp.eq.s32.totalorder %s26, 0
    %p179 = por %p177, %p178
    %s181 = sadd.s32 %s180, 1
    %p184 = scmp.eq.s32.totalorder %s20, 1
    %p185 = scmp.ne.s32.totalorder %s180, %s182
    %p186 = scmp.eq.s32.totalorder %s20, 0
    %p187 = por %p185, %p186
    %p188 = scmp.ne.s32.totalorder %s180, %s182
    %p189 = scmp.eq.s32.totalorder %s25, 1
    %p190 = por %p188, %p189
    %p191 = scmp.ne.s32.totalorder %s182, %s183
    %p192 = scmp.eq.s32.totalorder %s25, 0
    %p193 = por %p191, %p192
    %p194 = scmp.ne.s32.totalorder %s182, %s183
    %p195 = scmp.eq.s32.totalorder %s26, 1
    %p196 = por %p194, %p195
    %p198 = scmp.ne.s32.totalorder %s183, %s197
    %p199 = scmp.eq.s32.totalorder %s26, 0
    %p200 = por %p198, %p199
    %s202 = sadd.s32 %s201, 1
    %p205 = scmp.eq.s32.totalorder %s20, 1
    %p206 = scmp.ne.s32.totalorder %s201, %s203
    %p207 = scmp.eq.s32.totalorder %s20, 0
    %p208 = por %p206, %p207
    %p209 = scmp.ne.s32.totalorder %s201, %s203
    %p210 = scmp.eq.s32.totalorder %s25, 1
    %p211 = por %p209, %p210
    %p212 = scmp.ne.s32.totalorder %s203, %s204
    %p213 = scmp.eq.s32.totalorder %s25, 0
    %p214 = por %p212, %p213
    %p215 = scmp.ne.s32.totalorder %s203, %s204
    %p216 = scmp.eq.s32.totalorder %s26, 1
    %p217 = por %p215, %p216
    %p219 = scmp.ne.s32.totalorder %s204, %s218
    %p220 = scmp.eq.s32.totalorder %s26, 0
    %p221 = por %p219, %p220
    %s223 = sadd.s32 %s222, 1
    %p226 = scmp.eq.s32.totalorder %s20, 1
    %p227 = scmp.ne.s32.totalorder %s222, %s224
    %p228 = scmp.eq.s32.totalorder %s20, 0
    %p229 = por %p227, %p228
    %p230 = scmp.ne.s32.totalorder %s222, %s224
    %p231 = scmp.eq.s32.totalorder %s25, 1
    %p232 = por %p230, %p231
    %p233 = scmp.ne.s32.totalorder %s224, %s225
    %p234 = scmp.eq.s32.totalorder %s25, 0
    %p235 = por %p233, %p234
    %p236 = scmp.ne.s32.totalorder %s224, %s225
    %p237 = scmp.eq.s32.totalorder %s26, 1
    %p238 = por %p236, %p237
    %p240 = scmp.ne.s32.totalorder %s225, %s239
    %p241 = scmp.eq.s32.totalorder %s26, 0
    %p242 = por %p240, %p241
    %s244 = sadd.s32 %s243, 1
    %p247 = scmp.eq.s32.totalorder %s20, 1
    %p248 = scmp.ne.s32.totalorder %s243, %s245
    %p249 = scmp.eq.s32.totalorder %s20, 0
    %p250 = por %p248, %p249
    %p251 = scmp.ne.s32.totalorder %s243, %s245
    %p252 = scmp.eq.s32.totalorder %s25, 1
    %p253 = por %p251, %p252
    %p254 = scmp.ne.s32.totalorder %s245, %s246
    %p255 = scmp.eq.s32.totalorder %s25, 0
    %p256 = por %p254, %p255
    %p257 = scmp.ne.s32.totalorder %s245, %s246
    %p258 = scmp.eq.s32.totalorder %s26, 1
    %p259 = por %p257, %p258
    %p261 = scmp.ne.s32.totalorder %s246, %s260
    %p262 = scmp.eq.s32.totalorder %s26, 0
    %p263 = por %p261, %p262
    %s265 = sadd.s32 %s264, 1
    %p268 = scmp.eq.s32.totalorder %s20, 1
    %p269 = scmp.ne.s32.totalorder %s264, %s266
    %p270 = scmp.eq.s32.totalorder %s20, 0
    %p271 = por %p269, %p270
    %p272 = scmp.ne.s32.totalorder %s264, %s266
    %p273 = scmp.eq.s32.totalorder %s25, 1
    %p274 = por %p272, %p273
    %p275 = scmp.ne.s32.totalorder %s266, %s267
    %p276 = scmp.eq.s32.totalorder %s25, 0
    %p277 = por %p275, %p276
    %p278 = scmp.ne.s32.totalorder %s266, %s267
    %p279 = scmp.eq.s32.totalorder %s26, 1
    %p280 = por %p278, %p279
    %p282 = scmp.ne.s32.totalorder %s267, %s281
    %p283 = scmp.eq.s32.totalorder %s26, 0
    %p284 = por %p282, %p283
    %s286 = sadd.s32 %s285, 1
    %p289 = scmp.eq.s32.totalorder %s20, 1
    %p290 = scmp.ne.s32.totalorder %s285, %s287
    %p291 = scmp.eq.s32.totalorder %s20, 0
    %p292 = por %p290, %p291
    %p293 = scmp.ne.s32.totalorder %s285, %s287
    %p294 = scmp.eq.s32.totalorder %s25, 1
    %p295 = por %p293, %p294
    %p296 = scmp.ne.s32.totalorder %s287, %s288
    %p297 = scmp.eq.s32.totalorder %s25, 0
    %p298 = por %p296, %p297
    %p299 = scmp.ne.s32.totalorder %s287, %s288
    %p300 = scmp.eq.s32.totalorder %s26, 1
    %p301 = por %p299, %p300
    %p303 = scmp.ne.s32.totalorder %s288, %s302
    %p304 = scmp.eq.s32.totalorder %s26, 0
    %p305 = por %p303, %p304
    %s307 = sadd.s32 %s306, 1
    %p310 = scmp.eq.s32.totalorder %s20, 1
    %p311 = scmp.ne.s32.totalorder %s306, %s308
    %p312 = scmp.eq.s32.totalorder %s20, 0
    %p313 = por %p311, %p312
    %p314 = scmp.ne.s32.totalorder %s306, %s308
    %p315 = scmp.eq.s32.totalorder %s25, 1
    %p316 = por %p314, %p315
    %p317 = scmp.ne.s32.totalorder %s308, %s309
    %p318 = scmp.eq.s32.totalorder %s25, 0
    %p319 = por %p317, %p318
    %p320 = scmp.ne.s32.totalorder %s308, %s309
    %p321 = scmp.eq.s32.totalorder %s26, 1
    %p322 = por %p320, %p321
    %p324 = scmp.ne.s32.totalorder %s309, %s323
    %p325 = scmp.eq.s32.totalorder %s26, 0
    %p326 = por %p324, %p325
    %s327 = ssub.s32 %s20, %s27
    %p328 = scmp.eq.s32.totalorder %s327, 0
    %s330 = sadd.s32 %s329, 1
    %s331 = scalar_select %p328, %s329, %s330
    %p334 = pneg %p328
    %p335 = scmp.eq.s32.totalorder %s20, 1
    %p336 = por %p334, %p335
    %p337 = scmp.ne.s32.totalorder %s329, %s332
    %p338 = scmp.eq.s32.totalorder %s20, 0
    %p339 = por %p337, %p338
    %p340 = scmp.ne.s32.totalorder %s329, %s332
    %p341 = scmp.eq.s32.totalorder %s25, 1
    %p342 = por %p340, %p341
    %p343 = scmp.ne.s32.totalorder %s332, %s333
    %p344 = scmp.eq.s32.totalorder %s25, 0
    %p345 = por %p343, %p344
    %p346 = scmp.ne.s32.totalorder %s332, %s333
    %p347 = scmp.eq.s32.totalorder %s26, 1
    %p348 = por %p346, %p347
    %p350 = scmp.ne.s32.totalorder %s333, %s349
    %p351 = scmp.eq.s32.totalorder %s26, 0
    %p352 = por %p350, %p351
    %p353 = scmp.le.s32.totalorder 1, %s20
    %p354 = scmp.lt.s32.totalorder %s20, 3
    %p355 = pnand %p353, %p354
    %p356 = pneg %p355
    // Predicated region
    $region9: #{basic_layer_forward.2} parent=5 // pred_check
      _
    $region10: #{basic_layer_forward.2} parent=5 // pred_check_branch
      %358 = sbr.rel (%p355) target = $region12
    $region11: #{basic_layer_forward.2} parent=5 // pred_region
      %s359 = ssub.s32 %s20, 1
      // Predicated region
      $region13: #{basic_layer_forward.2} parent=11 // pred_check
        %p360 = pneg %p67
      $region14: #{basic_layer_forward.2} parent=11 // pred_check_branch
        %362 = sbr.rel (%p360) target = $region16
      $region15: #{basic_layer_forward.2} parent=11 // pred_region
        _
      $region16: #{basic_layer_forward.2} parent=11 // pred_fallthru
        _
      // Predicated region
      $region17: #{basic_layer_forward.2} parent=11 // pred_check
        %p363 = pneg %p88
      $region18: #{basic_layer_forward.2} parent=11 // pred_check_branch
        %365 = sbr.rel (%p363) target = $region20
      $region19: #{basic_layer_forward.2} parent=11 // pred_region
        _
      $region20: #{basic_layer_forward.2} parent=11 // pred_fallthru
        _
      // Predicated region
      $region21: #{basic_layer_forward.2} parent=11 // pred_check
        %p366 = pneg %p109
      $region22: #{basic_layer_forward.2} parent=11 // pred_check_branch
        %368 = sbr.rel (%p366) target = $region24
      $region23: #{basic_layer_forward.2} parent=11 // pred_region
        _
      $region24: #{basic_layer_forward.2} parent=11 // pred_fallthru
        _
      // Predicated region
      $region25: #{basic_layer_forward.2} parent=11 // pred_check
        %p369 = pneg %p130
      $region26: #{basic_layer_forward.2} parent=11 // pred_check_branch
        %371 = sbr.rel (%p369) target = $region28
      $region27: #{basic_layer_forward.2} parent=11 // pred_region
        _
      $region28: #{basic_layer_forward.2} parent=11 // pred_fallthru
        _
      // Predicated region
      $region29: #{basic_layer_forward.2} parent=11 // pred_check
        %p372 = pneg %p151
      $region30: #{basic_layer_forward.2} parent=11 // pred_check_branch
        %374 = sbr.rel (%p372) target = $region32
      $region31: #{basic_layer_forward.2} parent=11 // pred_region
        _
      $region32: #{basic_layer_forward.2} parent=11 // pred_fallthru
        _
      // Predicated region
      $region33: #{basic_layer_forward.2} parent=11 // pred_check
        %p375 = pneg %p172
      $region34: #{basic_layer_forward.2} parent=11 // pred_check_branch
        %377 = sbr.rel (%p375) target = $region36
      $region35: #{basic_layer_forward.2} parent=11 // pred_region
        _
      $region36: #{basic_layer_forward.2} parent=11 // pred_fallthru
        _
      // Predicated region
      $region37: #{basic_layer_forward.2} parent=11 // pred_check
        %p378 = pneg %p193
      $region38: #{basic_layer_forward.2} parent=11 // pred_check_branch
        %380 = sbr.rel (%p378) target = $region40
      $region39: #{basic_layer_forward.2} parent=11 // pred_region
        _
      $region40: #{basic_layer_forward.2} parent=11 // pred_fallthru
        _
      // Predicated region
      $region41: #{basic_layer_forward.2} parent=11 // pred_check
        %p381 = pneg %p214
      $region42: #{basic_layer_forward.2} parent=11 // pred_check_branch
        %383 = sbr.rel (%p381) target = $region44
      $region43: #{basic_layer_forward.2} parent=11 // pred_region
        _
      $region44: #{basic_layer_forward.2} parent=11 // pred_fallthru
        _
      // Predicated region
      $region45: #{basic_layer_forward.2} parent=11 // pred_check
        %p384 = pneg %p235
      $region46: #{basic_layer_forward.2} parent=11 // pred_check_branch
        %386 = sbr.rel (%p384) target = $region48
      $region47: #{basic_layer_forward.2} parent=11 // pred_region
        _
      $region48: #{basic_layer_forward.2} parent=11 // pred_fallthru
        _
      // Predicated region
      $region49: #{basic_layer_forward.2} parent=11 // pred_check
        %p387 = pneg %p256
      $region50: #{basic_layer_forward.2} parent=11 // pred_check_branch
        %389 = sbr.rel (%p387) target = $region52
      $region51: #{basic_layer_forward.2} parent=11 // pred_region
        _
      $region52: #{basic_layer_forward.2} parent=11 // pred_fallthru
        _
      // Predicated region
      $region53: #{basic_layer_forward.2} parent=11 // pred_check
        %p390 = pneg %p277
      $region54: #{basic_layer_forward.2} parent=11 // pred_check_branch
        %392 = sbr.rel (%p390) target = $region56
      $region55: #{basic_layer_forward.2} parent=11 // pred_region
        _
      $region56: #{basic_layer_forward.2} parent=11 // pred_fallthru
        _
      // Predicated region
      $region57: #{basic_layer_forward.2} parent=11 // pred_check
        %p393 = pneg %p298
      $region58: #{basic_layer_forward.2} parent=11 // pred_check_branch
        %395 = sbr.rel (%p393) target = $region60
      $region59: #{basic_layer_forward.2} parent=11 // pred_region
        _
      $region60: #{basic_layer_forward.2} parent=11 // pred_fallthru
        _
      // Predicated region
      $region61: #{basic_layer_forward.2} parent=11 // pred_check
        %p396 = pneg %p319
      $region62: #{basic_layer_forward.2} parent=11 // pred_check_branch
        %398 = sbr.rel (%p396) target = $region64
      $region63: #{basic_layer_forward.2} parent=11 // pred_region
        _
      $region64: #{basic_layer_forward.2} parent=11 // pred_fallthru
        _
    $region12: #{basic_layer_forward.2} parent=5 // pred_fallthru
      _
    %p399 = scmp.lt.s32.totalorder %s20, 2
    // Predicated region
    $region65: #{basic_layer_forward.2} parent=5 // pred_check
      %p400 = pneg %p399
    $region66: #{basic_layer_forward.2} parent=5 // pred_check_branch
      %402 = sbr.rel (%p400) target = $region68
    $region67: #{basic_layer_forward.2} parent=5 // pred_region
      // Predicated region
      $region69: #{basic_layer_forward.2} parent=67 // pred_check
        %p403 = pneg %p40
      $region70: #{basic_layer_forward.2} parent=67 // pred_check_branch
        %405 = sbr.rel (%p403) target = $region72
      $region71: #{basic_layer_forward.2} parent=67 // pred_region
        %s406 = smul.u32 4, %s20
        %p407 = scmp.lt.s32.totalorder %s406, 7
        %s408 = scalar_select %p407, %s406, 7
        %s409 = smul.addr %s408, 2
        %s410 = smul.addr %s409, 8
        %s411 = scalar_lea.vmem %s0, %s410
        %s412 = smul.u32 4, %s20
      $region72: #{basic_layer_forward.2} parent=67 // pred_fallthru
        _
    $region68: #{basic_layer_forward.2} parent=5 // pred_fallthru
      _
    %p413 = scmp.le.s32.totalorder 1, %s20
    %p414 = scmp.lt.s32.totalorder %s20, 3
    %p415 = pnand %p413, %p414
    %p416 = pneg %p415
    // Predicated region
    $region73: #{basic_layer_forward.2} parent=5 // pred_check
      _
    $region74: #{basic_layer_forward.2} parent=5 // pred_check_branch
      %418 = sbr.rel (%p415) target = $region76
    $region75: #{basic_layer_forward.2} parent=5 // pred_region
      %s419 = ssub.s32 %s20, 1
      %s420 = smul.u32 4, %s25
      %p421 = scmp.lt.s32.totalorder %s420, 7
      %s422 = scalar_select %p421, %s420, 7
      %s423 = smul.addr %s422, 2
      %s424 = smul.addr %s423, 8
      %s425 = scalar_lea.vmem %s0, %s424
      %p426 = pneg %p46
      %p427 = pneg %p43
      %p428 = pneg %p67
      %p429 = pneg %p64
      %p430 = pneg %p88
      %p431 = pneg %p85
      %p432 = pneg %p109
      %p433 = pneg %p106
      %p434 = pneg %p130
      %p435 = pneg %p127
      %p436 = pneg %p151
      %p437 = pneg %p148
      %p438 = pneg %p172
      %p439 = pneg %p169
      %p440 = pneg %p193
      %p441 = pneg %p190
      %p442 = pneg %p214
      %p443 = pneg %p211
      %p444 = pneg %p235
      %p445 = pneg %p232
      %p446 = pneg %p256
      %p447 = pneg %p253
      %p448 = pneg %p277
      %p449 = pneg %p274
      %p450 = pneg %p298
      %p451 = pneg %p295
      %p452 = pneg %p319
      %p453 = pneg %p316
      %p454 = pneg %p345
      %p455 = pneg %p342
      %s456 = smul.u32 4, %s25
      %p457 = scmp.lt.s32.totalorder %s456, 7
      %s458 = scalar_select %p457, %s456, 7
      %s459 = smul.addr %s458, 2
      %s460 = smul.addr %s459, 8
      %s461 = scalar_lea.vmem %s14, %s460
      %s462 = smul.u32 4, %s25
      %p463 = scmp.lt.s32.totalorder %s462, 7
      %s464 = scalar_select %p463, %s462, 7
      %s465 = smul.addr %s464, 2
      %s466 = smul.addr %s465, 8
      %s467 = scalar_lea.vmem %s0, %s466
      %s468 = smul.u32 4, %s25
      %s469 = smul.u32 4, %s25
      %p470 = scmp.lt.s32.totalorder %s469, 7
      %s471 = scalar_select %p470, %s469, 7
      %s472 = smul.addr %s471, 2
      %s473 = smul.addr %s472, 8
      %s474 = scalar_lea.vmem %s14, %s473
      %s475 = smul.u32 4, %s25
      %v477 = vld [vmem:[%s467] sm:$0xff]
      %v478 = vld [vmem:[%s467 + $0x8] sm:$0xff]
      %v479 = vld [vmem:[%s467 + $0x10] sm:$0xff]
      %v480 = vld [vmem:[%s467 + $0x18] sm:$0xff]
      %v481 = vld [vmem:[%s467 + $0x20] sm:$0xff]
      %v482 = vld [vmem:[%s467 + $0x28] sm:$0xff]
      %v483 = vld [vmem:[%s467 + $0x30] sm:$0xff]
      %v484 = vld [vmem:[%s467 + $0x38] sm:$0xff]
      %vm485 = vcmask 261120
      %v486 = vsel %vm485, %v477, 0.0
      %487 = vadd.xlane.f32.xlu0 %v486
      %v488 = vpop.xlane.xlu0 %487
      %v489 = vsel %vm485, %v478, 0.0
      %490 = vadd.xlane.f32.xlu0 %v489
      %v491 = vpop.xlane.xlu0 %490
      %v492 = vsel %vm485, %v479, 0.0
      %493 = vadd.xlane.f32.xlu0 %v492
      %v494 = vpop.xlane.xlu0 %493
      %v495 = vsel %vm485, %v480, 0.0
      %496 = vadd.xlane.f32.xlu0 %v495
      %v497 = vpop.xlane.xlu0 %496
      %v498 = vsel %vm485, %v481, 0.0
      %499 = vadd.xlane.f32.xlu0 %v498
      %v500 = vpop.xlane.xlu0 %499
      %v501 = vsel %vm485, %v482, 0.0
      %502 = vadd.xlane.f32.xlu0 %v501
      %v503 = vpop.xlane.xlu0 %502
      %v504 = vsel %vm485, %v483, 0.0
      %505 = vadd.xlane.f32.xlu0 %v504
      %v506 = vpop.xlane.xlu0 %505
      %v507 = vsel %vm485, %v484, 0.0
      %508 = vadd.xlane.f32.xlu0 %v507
      %v509 = vpop.xlane.xlu0 %508
      %v510 = vrcp.pop 32.0
      %v511 = vmul.f32 32.0, %v510
      %v512 = vsub.f32 1.0, %v511
      %v513 = vmul.f32 %v510, %v512
      %v514 = vadd.f32 %v510, %v513
      %vm515 = vweird.f32 %v510
      %v516 = vsel %vm515, %v510, %v514
      %v517 = vmul.f32 %v488, %v516
      %v518 = vmul.f32 %v491, %v516
      %v519 = vmul.f32 %v494, %v516
      %v520 = vmul.f32 %v497, %v516
      %v521 = vmul.f32 %v500, %v516
      %v522 = vmul.f32 %v503, %v516
      %v523 = vmul.f32 %v506, %v516
      %v524 = vmul.f32 %v509, %v516
      %v525 = vsub.f32 %v477, %v517
      %v526 = vsub.f32 %v478, %v518
      %v527 = vsub.f32 %v479, %v519
      %v528 = vsub.f32 %v480, %v520
      %v529 = vsub.f32 %v481, %v521
      %v530 = vsub.f32 %v482, %v522
      %v531 = vsub.f32 %v483, %v523
      %v532 = vsub.f32 %v484, %v524
      %v533 = vmul.f32 %v525, %v525
      %v534 = vmul.f32 %v526, %v526
      %v535 = vmul.f32 %v527, %v527
      %v536 = vmul.f32 %v528, %v528
      %v537 = vmul.f32 %v529, %v529
      %v538 = vmul.f32 %v530, %v530
      %v539 = vmul.f32 %v531, %v531
      %v540 = vmul.f32 %v532, %v532
      %v541 = vsel %vm485, %v533, 0.0
      %542 = vadd.xlane.f32.xlu0 %v541
      %v543 = vpop.xlane.xlu0 %542
      %v544 = vsel %vm485, %v534, 0.0
      %545 = vadd.xlane.f32.xlu0 %v544
      %v546 = vpop.xlane.xlu0 %545
      %v547 = vsel %vm485, %v535, 0.0
      %548 = vadd.xlane.f32.xlu0 %v547
      %v549 = vpop.xlane.xlu0 %548
      %v550 = vsel %vm485, %v536, 0.0
      %551 = vadd.xlane.f32.xlu0 %v550
      %v552 = vpop.xlane.xlu0 %551
      %v553 = vsel %vm485, %v537, 0.0
      %554 = vadd.xlane.f32.xlu0 %v553
      %v555 = vpop.xlane.xlu0 %554
      %v556 = vsel %vm485, %v538, 0.0
      %557 = vadd.xlane.f32.xlu0 %v556
      %v558 = vpop.xlane.xlu0 %557
      %v559 = vsel %vm485, %v539, 0.0
      %560 = vadd.xlane.f32.xlu0 %v559
      %v561 = vpop.xlane.xlu0 %560
      %v562 = vsel %vm485, %v540, 0.0
      %563 = vadd.xlane.f32.xlu0 %v562
      %v564 = vpop.xlane.xlu0 %563
      %v565 = vmul.f32 %v543, %v516
      %v566 = vmul.f32 %v546, %v516
      %v567 = vmul.f32 %v549, %v516
      %v568 = vmul.f32 %v552, %v516
      %v569 = vmul.f32 %v555, %v516
      %v570 = vmul.f32 %v558, %v516
      %v571 = vmul.f32 %v561, %v516
      %v572 = vmul.f32 %v564, %v516
      %v573 = vadd.f32 %v565, 1e-05
      %v574 = vadd.f32 %v566, 1e-05
      %v575 = vadd.f32 %v567, 1e-05
      %v576 = vadd.f32 %v568, 1e-05
      %v577 = vadd.f32 %v569, 1e-05
      %v578 = vadd.f32 %v570, 1e-05
      %v579 = vadd.f32 %v571, 1e-05
      %v580 = vadd.f32 %v572, 1e-05
      %v581 = vrsqrt.pop %v573
      %v582 = vmul.f32 %v581, %v573
      %v583 = vmul.f32 %v582, %v581
      %v584 = vmul.f32 0.5, %v583
      %v585 = vsub.f32 1.5, %v584
      %v586 = vmul.f32 %v581, %v585
      %vm587 = vweird.f32 %v573
      %vm588 = vweird.f32 %v581
      %vm589 = vmor %vm587, %vm588
      %v590 = vsel %vm589, %v581, %v586
      %v591 = vrsqrt.pop %v574
      %v592 = vmul.f32 %v591, %v574
      %v593 = vmul.f32 %v592, %v591
      %v594 = vmul.f32 0.5, %v593
      %v595 = vsub.f32 1.5, %v594
      %v596 = vmul.f32 %v591, %v595
      %vm597 = vweird.f32 %v574
      %vm598 = vweird.f32 %v591
      %vm599 = vmor %vm597, %vm598
      %v600 = vsel %vm599, %v591, %v596
      %v601 = vrsqrt.pop %v575
      %v602 = vmul.f32 %v601, %v575
      %v603 = vmul.f32 %v602, %v601
      %v604 = vmul.f32 0.5, %v603
      %v605 = vsub.f32 1.5, %v604
      %v606 = vmul.f32 %v601, %v605
      %vm607 = vweird.f32 %v575
      %vm608 = vweird.f32 %v601
      %vm609 = vmor %vm607, %vm608
      %v610 = vsel %vm609, %v601, %v606
      %v611 = vrsqrt.pop %v576
      %v612 = vmul.f32 %v611, %v576
      %v613 = vmul.f32 %v612, %v611
      %v614 = vmul.f32 0.5, %v613
      %v615 = vsub.f32 1.5, %v614
      %v616 = vmul.f32 %v611, %v615
      %vm617 = vweird.f32 %v576
      %vm618 = vweird.f32 %v611
      %vm619 = vmor %vm617, %vm618
      %v620 = vsel %vm619, %v611, %v616
      %v621 = vrsqrt.pop %v577
      %v622 = vmul.f32 %v621, %v577
      %v623 = vmul.f32 %v622, %v621
      %v624 = vmul.f32 0.5, %v623
      %v625 = vsub.f32 1.5, %v624
      %v626 = vmul.f32 %v621, %v625
      %vm627 = vweird.f32 %v577
      %vm628 = vweird.f32 %v621
      %vm629 = vmor %vm627, %vm628
      %v630 = vsel %vm629, %v621, %v626
      %v631 = vrsqrt.pop %v578
      %v632 = vmul.f32 %v631, %v578
      %v633 = vmul.f32 %v632, %v631
      %v634 = vmul.f32 0.5, %v633
      %v635 = vsub.f32 1.5, %v634
      %v636 = vmul.f32 %v631, %v635
      %vm637 = vweird.f32 %v578
      %vm638 = vweird.f32 %v631
      %vm639 = vmor %vm637, %vm638
      %v640 = vsel %vm639, %v631, %v636
      %v641 = vrsqrt.pop %v579
      %v642 = vmul.f32 %v641, %v579
      %v643 = vmul.f32 %v642, %v641
      %v644 = vmul.f32 0.5, %v643
      %v645 = vsub.f32 1.5, %v644
      %v646 = vmul.f32 %v641, %v645
      %vm647 = vweird.f32 %v579
      %vm648 = vweird.f32 %v641
      %vm649 = vmor %vm647, %vm648
      %v650 = vsel %vm649, %v641, %v646
      %v651 = vrsqrt.pop %v580
      %v652 = vmul.f32 %v651, %v580
      %v653 = vmul.f32 %v652, %v651
      %v654 = vmul.f32 0.5, %v653
      %v655 = vsub.f32 1.5, %v654
      %v656 = vmul.f32 %v651, %v655
      %vm657 = vweird.f32 %v580
      %vm658 = vweird.f32 %v651
      %vm659 = vmor %vm657, %vm658
      %v660 = vsel %vm659, %v651, %v656
      %v661 = vmul.f32 %v525, %v590
      %v662 = vmul.f32 %v526, %v600
      %v663 = vmul.f32 %v527, %v610
      %v664 = vmul.f32 %v528, %v620
      %v665 = vmul.f32 %v529, %v630
      %v666 = vmul.f32 %v530, %v640
      %v667 = vmul.f32 %v531, %v650
      %v668 = vmul.f32 %v532, %v660
      %v669 = vld [vmem:[%s2] sm:$0x1]
      %v671 = vperm.slane %v669, 0
      %v673 = vmul.f32 %v661, %v671
      %v674 = vmul.f32 %v662, %v671
      %v675 = vmul.f32 %v663, %v671
      %v676 = vmul.f32 %v664, %v671
      %v677 = vmul.f32 %v665, %v671
      %v678 = vmul.f32 %v666, %v671
      %v679 = vmul.f32 %v667, %v671
      %v680 = vmul.f32 %v668, %v671
      %v681 = vld [vmem:[%s3] sm:$0x1]
      %v683 = vperm.slane %v681, 0
      %v685 = vadd.f32 %v673, %v683
      %v686 = vadd.f32 %v674, %v683
      %v687 = vadd.f32 %v675, %v683
      %v688 = vadd.f32 %v676, %v683
      %v689 = vadd.f32 %v677, %v683
      %v690 = vadd.f32 %v678, %v683
      %v691 = vadd.f32 %v679, %v683
      %v692 = vadd.f32 %v680, %v683
      %v693 = vpack.c.bf16 %v686, %v685
      %v694 = vpack.c.bf16 %v688, %v687
      %v695 = vpack.c.bf16 %v690, %v689
      %v696 = vpack.c.bf16 %v692, %v691
      %v697 = vld [vmem:[%s4] sm:$0xf]
      %v698 = vld [vmem:[%s4 + $0x4] sm:$0xf]
      %v699 = vld [vmem:[%s4 + $0x8] sm:$0xf]
      %v700 = vld [vmem:[%s4 + $0xc] sm:$0xf]
      %v701 = vld [vmem:[%s5] sm:$0x1]
      %v703 = vperm.slane %v701, 0
      %v709 = vunpack.c.l.b16 %v697
      %v710 = vunpack.c.l.b16 %v698
      %v711 = vunpack.c.l.b16 %v699
      %v712 = vunpack.c.l.b16 %v700
      %v713 = vpack.c.b16 %v710, %v709
      %v714 = vpack.c.b16 %v712, %v711
      %v718 = vsel %vm485, %v693, 0
      %v721 = vsel %vm485, %v694, 0
      %v724 = vsel %vm485, %v695, 0
      %v727 = vsel %vm485, %v696, 0
      %729 = vmatpush.bf16.msra.mxu0 0
      %730 = vmatpush.bf16.msra.mxu0 0
      %731 = vmatpush.bf16.msra.mxu0 0
      %732 = vmatpush.bf16.msra.mxu0 0
      %733 = vmatpush.bf16.msra.mxu0 0
      %734 = vmatpush.bf16.msra.mxu0 0
      %735 = vmatpush.bf16.msra.mxu0 %v714
      %736 = vmatpush.bf16.msra.mxu0 %v713
      %737 = vmatmul.bf16.gmra.mxu0 %v718
      %v738 = vpop.f32.mrf.mxu0
      %v739 = vadd.f32 %v703, %v738
      %v740 = vpop.f32.mrf.mxu0
      %v741 = vadd.f32 %v703, %v740
      %742 = vmatmul.bf16.gmra.mxu0 %v721
      %v743 = vpop.f32.mrf.mxu0
      %v744 = vadd.f32 %v703, %v743
      %v745 = vpop.f32.mrf.mxu0
      %v746 = vadd.f32 %v703, %v745
      %747 = vmatmul.bf16.gmra.mxu0 %v724
      %v748 = vpop.f32.mrf.mxu0
      %v749 = vadd.f32 %v703, %v748
      %v750 = vpop.f32.mrf.mxu0
      %v751 = vadd.f32 %v703, %v750
      %752 = vmatmul.bf16.gmra.mxu0 %v727
      %v753 = vpop.f32.mrf.mxu0
      %v754 = vadd.f32 %v703, %v753
      %v755 = vpop.f32.mrf.mxu0
      %v756 = vadd.f32 %v703, %v755
      %757 = vdwg.mxu0
      %v758 = vpack.c.bf16 %v739, %v739
      %v759 = vpack.c.bf16 %v741, %v741
      %v760 = vpack.c.bf16 %v744, %v744
      %v761 = vpack.c.bf16 %v746, %v746
      %v762 = vpack.c.bf16 %v749, %v749
      %v763 = vpack.c.bf16 %v751, %v751
      %v764 = vpack.c.bf16 %v754, %v754
      %v765 = vpack.c.bf16 %v756, %v756
      %774 = vrot.lane.b32.xlu0 %v758, 120
      %v775 = vpop.permute.xlu0 %774
      %776 = vrot.lane.b32.xlu0 %v759, 120
      %v777 = vpop.permute.xlu0 %776
      %778 = vrot.lane.b32.xlu0 %v760, 120
      %v779 = vpop.permute.xlu0 %778
      %780 = vrot.lane.b32.xlu0 %v761, 120
      %v781 = vpop.permute.xlu0 %780
      %782 = vrot.lane.b32.xlu0 %v762, 120
      %v783 = vpop.permute.xlu0 %782
      %784 = vrot.lane.b32.xlu0 %v763, 120
      %v785 = vpop.permute.xlu0 %784
      %786 = vrot.lane.b32.xlu0 %v764, 120
      %v787 = vpop.permute.xlu0 %786
      %788 = vrot.lane.b32.xlu0 %v765, 120
      %v789 = vpop.permute.xlu0 %788
      %790 = vrot.lane.b32.xlu0 %v758, 112
      %v791 = vpop.permute.xlu0 %790
      %792 = vrot.lane.b32.xlu0 %v759, 112
      %v793 = vpop.permute.xlu0 %792
      %794 = vrot.lane.b32.xlu0 %v760, 112
      %v795 = vpop.permute.xlu0 %794
      %796 = vrot.lane.b32.xlu0 %v761, 112
      %v797 = vpop.permute.xlu0 %796
      %798 = vrot.lane.b32.xlu0 %v762, 112
      %v799 = vpop.permute.xlu0 %798
      %800 = vrot.lane.b32.xlu0 %v763, 112
      %v801 = vpop.permute.xlu0 %800
      %802 = vrot.lane.b32.xlu0 %v764, 112
      %v803 = vpop.permute.xlu0 %802
      %804 = vrot.lane.b32.xlu0 %v765, 112
      %v805 = vpop.permute.xlu0 %804
      %806 = vrot.lane.b32.xlu0 %v758, 104
      %v807 = vpop.permute.xlu0 %806
      %808 = vrot.lane.b32.xlu0 %v759, 104
      %v809 = vpop.permute.xlu0 %808
      %810 = vrot.lane.b32.xlu0 %v760, 104
      %v811 = vpop.permute.xlu0 %810
      %812 = vrot.lane.b32.xlu0 %v761, 104
      %v813 = vpop.permute.xlu0 %812
      %814 = vrot.lane.b32.xlu0 %v762, 104
      %v815 = vpop.permute.xlu0 %814
      %816 = vrot.lane.b32.xlu0 %v763, 104
      %v817 = vpop.permute.xlu0 %816
      %818 = vrot.lane.b32.xlu0 %v764, 104
      %v819 = vpop.permute.xlu0 %818
      %820 = vrot.lane.b32.xlu0 %v765, 104
      %v821 = vpop.permute.xlu0 %820
      %v822 = vunpack.c.l.b16 %v758
      %v823 = vunpack.c.l.b16 %v759
      %v824 = vpack.c.b16 %v823, %v822
      %825 = vrot.lane.b32.xlu0 %v824, 96
      %v826 = vpop.permute.xlu0 %825
      %vm827 = vcmask 64512
      %v829 = vsel %vm827, %v824, 0
      %v832 = vsel %vm827, %v826, 0
      %834 = vmatpush.bf16.xpose.msra.mxu0 0
      %835 = vmatpush.bf16.xpose.msra.mxu0 0
      %836 = vmatpush.bf16.xpose.msra.mxu0 0
      %837 = vmatpush.bf16.xpose.msra.mxu0 0
      %838 = vmatpush.bf16.xpose.msra.mxu0 0
      %839 = vmatpush.bf16.xpose.msra.mxu0 0
      %840 = vmatpush.bf16.xpose.msra.mxu0 0
      %841 = vmatpush.bf16.xpose.msra.mxu0 %v832
      %842 = vmatmul.bf16.gmra.mxu0 %v829
      %v843 = vpop.f32.mrf.mxu0
      %v844 = vadd.f32 0.0, %v843
      %v845 = vpop.f32.mrf.mxu0
      %v846 = vadd.f32 0.0, %v845
      %847 = vdwg.mxu0
      %v848 = vunpack.c.l.b16 %v760
      %v849 = vunpack.c.l.b16 %v761
      %v850 = vpack.c.b16 %v849, %v848
      %851 = vrot.lane.b32.xlu0 %v850, 96
      %v852 = vpop.permute.xlu0 %851
      %v854 = vsel %vm827, %v850, 0
      %v857 = vsel %vm827, %v852, 0
      %859 = vmatpush.bf16.xpose.msra.mxu0 0
      %860 = vmatpush.bf16.xpose.msra.mxu0 0
      %861 = vmatpush.bf16.xpose.msra.mxu0 0
      %862 = vmatpush.bf16.xpose.msra.mxu0 0
      %863 = vmatpush.bf16.xpose.msra.mxu0 0
      %864 = vmatpush.bf16.xpose.msra.mxu0 0
      %865 = vmatpush.bf16.xpose.msra.mxu0 0
      %866 = vmatpush.bf16.xpose.msra.mxu0 %v857
      %867 = vmatmul.bf16.gmra.mxu0 %v854
      %v868 = vpop.f32.mrf.mxu0
      %v869 = vadd.f32 0.0, %v868
      %v870 = vpop.f32.mrf.mxu0
      %v871 = vadd.f32 0.0, %v870
      %872 = vdwg.mxu0
      %v873 = vunpack.c.l.b16 %v762
      %v874 = vunpack.c.l.b16 %v763
      %v875 = vpack.c.b16 %v874, %v873
      %876 = vrot.lane.b32.xlu0 %v875, 96
      %v877 = vpop.permute.xlu0 %876
      %v879 = vsel %vm827, %v875, 0
      %v882 = vsel %vm827, %v877, 0
      %884 = vmatpush.bf16.xpose.msra.mxu0 0
      %885 = vmatpush.bf16.xpose.msra.mxu0 0
      %886 = vmatpush.bf16.xpose.msra.mxu0 0
      %887 = vmatpush.bf16.xpose.msra.mxu0 0
      %888 = vmatpush.bf16.xpose.msra.mxu0 0
      %889 = vmatpush.bf16.xpose.msra.mxu0 0
      %890 = vmatpush.bf16.xpose.msra.mxu0 0
      %891 = vmatpush.bf16.xpose.msra.mxu0 %v882
      %892 = vmatmul.bf16.gmra.mxu0 %v879
      %v893 = vpop.f32.mrf.mxu0
      %v894 = vadd.f32 0.0, %v893
      %v895 = vpop.f32.mrf.mxu0
      %v896 = vadd.f32 0.0, %v895
      %897 = vdwg.mxu0
      %v898 = vunpack.c.l.b16 %v764
      %v899 = vunpack.c.l.b16 %v765
      %v900 = vpack.c.b16 %v899, %v898
      %901 = vrot.lane.b32.xlu0 %v900, 96
      %v902 = vpop.permute.xlu0 %901
      %v904 = vsel %vm827, %v900, 0
      %v907 = vsel %vm827, %v902, 0
      %909 = vmatpush.bf16.xpose.msra.mxu0 0
      %910 = vmatpush.bf16.xpose.msra.mxu0 0
      %911 = vmatpush.bf16.xpose.msra.mxu0 0
      %912 = vmatpush.bf16.xpose.msra.mxu0 0
      %913 = vmatpush.bf16.xpose.msra.mxu0 0
      %914 = vmatpush.bf16.xpose.msra.mxu0 0
      %915 = vmatpush.bf16.xpose.msra.mxu0 0
      %916 = vmatpush.bf16.xpose.msra.mxu0 %v907
      %917 = vmatmul.bf16.gmra.mxu0 %v904
      %v918 = vpop.f32.mrf.mxu0
      %v919 = vadd.f32 0.0, %v918
      %v920 = vpop.f32.mrf.mxu0
      %v921 = vadd.f32 0.0, %v920
      %922 = vdwg.mxu0
      %v923 = vunpack.c.l.b16 %v775
      %v924 = vunpack.c.l.b16 %v777
      %v925 = vpack.c.b16 %v924, %v923
      %926 = vrot.lane.b32.xlu0 %v925, 96
      %v927 = vpop.permute.xlu0 %926
      %v929 = vsel %vm827, %v925, 0
      %v932 = vsel %vm827, %v927, 0
      %934 = vmatpush.bf16.xpose.msra.mxu0 0
      %935 = vmatpush.bf16.xpose.msra.mxu0 0
      %936 = vmatpush.bf16.xpose.msra.mxu0 0
      %937 = vmatpush.bf16.xpose.msra.mxu0 0
      %938 = vmatpush.bf16.xpose.msra.mxu0 0
      %939 = vmatpush.bf16.xpose.msra.mxu0 0
      %940 = vmatpush.bf16.xpose.msra.mxu0 0
      %941 = vmatpush.bf16.xpose.msra.mxu0 %v932
      %942 = vmatmul.bf16.gmra.mxu0 %v929
      %v943 = vpop.f32.mrf.mxu0
      %v944 = vadd.f32 0.0, %v943
      %v945 = vpop.f32.mrf.mxu0
      %v946 = vadd.f32 0.0, %v945
      %947 = vdwg.mxu0
      %v948 = vunpack.c.l.b16 %v779
      %v949 = vunpack.c.l.b16 %v781
      %v950 = vpack.c.b16 %v949, %v948
      %951 = vrot.lane.b32.xlu0 %v950, 96
      %v952 = vpop.permute.xlu0 %951
      %v954 = vsel %vm827, %v950, 0
      %v957 = vsel %vm827, %v952, 0
      %959 = vmatpush.bf16.xpose.msra.mxu0 0
      %960 = vmatpush.bf16.xpose.msra.mxu0 0
      %961 = vmatpush.bf16.xpose.msra.mxu0 0
      %962 = vmatpush.bf16.xpose.msra.mxu0 0
      %963 = vmatpush.bf16.xpose.msra.mxu0 0
      %964 = vmatpush.bf16.xpose.msra.mxu0 0
      %965 = vmatpush.bf16.xpose.msra.mxu0 0
      %966 = vmatpush.bf16.xpose.msra.mxu0 %v957
      %967 = vmatmul.bf16.gmra.mxu0 %v954
      %v968 = vpop.f32.mrf.mxu0
      %v969 = vadd.f32 0.0, %v968
      %v970 = vpop.f32.mrf.mxu0
      %v971 = vadd.f32 0.0, %v970
      %972 = vdwg.mxu0
      %v973 = vunpack.c.l.b16 %v783
      %v974 = vunpack.c.l.b16 %v785
      %v975 = vpack.c.b16 %v974, %v973
      %976 = vrot.lane.b32.xlu0 %v975, 96
      %v977 = vpop.permute.xlu0 %976
      %v979 = vsel %vm827, %v975, 0
      %v982 = vsel %vm827, %v977, 0
      %984 = vmatpush.bf16.xpose.msra.mxu0 0
      %985 = vmatpush.bf16.xpose.msra.mxu0 0
      %986 = vmatpush.bf16.xpose.msra.mxu0 0
      %987 = vmatpush.bf16.xpose.msra.mxu0 0
      %988 = vmatpush.bf16.xpose.msra.mxu0 0
      %989 = vmatpush.bf16.xpose.msra.mxu0 0
      %990 = vmatpush.bf16.xpose.msra.mxu0 0
      %991 = vmatpush.bf16.xpose.msra.mxu0 %v982
      %992 = vmatmul.bf16.gmra.mxu0 %v979
      %v993 = vpop.f32.mrf.mxu0
      %v994 = vadd.f32 0.0, %v993
      %v995 = vpop.f32.mrf.mxu0
      %v996 = vadd.f32 0.0, %v995
      %997 = vdwg.mxu0
      %v998 = vunpack.c.l.b16 %v787
      %v999 = vunpack.c.l.b16 %v789
      %v1000 = vpack.c.b16 %v999, %v998
      %1001 = vrot.lane.b32.xlu0 %v1000, 96
      %v1002 = vpop.permute.xlu0 %1001
      %v1004 = vsel %vm827, %v1000, 0
      %v1007 = vsel %vm827, %v1002, 0
      %1009 = vmatpush.bf16.xpose.msra.mxu0 0
      %1010 = vmatpush.bf16.xpose.msra.mxu0 0
      %1011 = vmatpush.bf16.xpose.msra.mxu0 0
      %1012 = vmatpush.bf16.xpose.msra.mxu0 0
      %1013 = vmatpush.bf16.xpose.msra.mxu0 0
      %1014 = vmatpush.bf16.xpose.msra.mxu0 0
      %1015 = vmatpush.bf16.xpose.msra.mxu0 0
      %1016 = vmatpush.bf16.xpose.msra.mxu0 %v1007
      %1017 = vmatmul.bf16.gmra.mxu0 %v1004
      %v1018 = vpop.f32.mrf.mxu0
      %v1019 = vadd.f32 0.0, %v1018
      %v1020 = vpop.f32.mrf.mxu0
      %v1021 = vadd.f32 0.0, %v1020
      %1022 = vdwg.mxu0
      %v1023 = vunpack.c.l.b16 %v791
      %v1024 = vunpack.c.l.b16 %v793
      %v1025 = vpack.c.b16 %v1024, %v1023
      %1026 = vrot.lane.b32.xlu0 %v1025, 96
      %v1027 = vpop.permute.xlu0 %1026
      %v1029 = vsel %vm827, %v1025, 0
      %v1032 = vsel %vm827, %v1027, 0
      %1034 = vmatpush.bf16.xpose.msra.mxu0 0
      %1035 = vmatpush.bf16.xpose.msra.mxu0 0
      %1036 = vmatpush.bf16.xpose.msra.mxu0 0
      %1037 = vmatpush.bf16.xpose.msra.mxu0 0
      %1038 = vmatpush.bf16.xpose.msra.mxu0 0
      %1039 = vmatpush.bf16.xpose.msra.mxu0 0
      %1040 = vmatpush.bf16.xpose.msra.mxu0 0
      %1041 = vmatpush.bf16.xpose.msra.mxu0 %v1032
      %1042 = vmatmul.bf16.gmra.mxu0 %v1029
      %v1043 = vpop.f32.mrf.mxu0
      %v1044 = vadd.f32 0.0, %v1043
      %v1045 = vpop.f32.mrf.mxu0
      %v1046 = vadd.f32 0.0, %v1045
      %1047 = vdwg.mxu0
      %v1048 = vunpack.c.l.b16 %v795
      %v1049 = vunpack.c.l.b16 %v797
      %v1050 = vpack.c.b16 %v1049, %v1048
      %1051 = vrot.lane.b32.xlu0 %v1050, 96
      %v1052 = vpop.permute.xlu0 %1051
      %v1054 = vsel %vm827, %v1050, 0
      %v1057 = vsel %vm827, %v1052, 0
      %1059 = vmatpush.bf16.xpose.msra.mxu0 0
      %1060 = vmatpush.bf16.xpose.msra.mxu0 0
      %1061 = vmatpush.bf16.xpose.msra.mxu0 0
      %1062 = vmatpush.bf16.xpose.msra.mxu0 0
      %1063 = vmatpush.bf16.xpose.msra.mxu0 0
      %1064 = vmatpush.bf16.xpose.msra.mxu0 0
      %1065 = vmatpush.bf16.xpose.msra.mxu0 0
      %1066 = vmatpush.bf16.xpose.msra.mxu0 %v1057
      %1067 = vmatmul.bf16.gmra.mxu0 %v1054
      %v1068 = vpop.f32.mrf.mxu0
      %v1069 = vadd.f32 0.0, %v1068
      %v1070 = vpop.f32.mrf.mxu0
      %v1071 = vadd.f32 0.0, %v1070
      %1072 = vdwg.mxu0
      %v1073 = vunpack.c.l.b16 %v799
      %v1074 = vunpack.c.l.b16 %v801
      %v1075 = vpack.c.b16 %v1074, %v1073
      %1076 = vrot.lane.b32.xlu0 %v1075, 96
      %v1077 = vpop.permute.xlu0 %1076
      %v1079 = vsel %vm827, %v1075, 0
      %v1082 = vsel %vm827, %v1077, 0
      %1084 = vmatpush.bf16.xpose.msra.mxu0 0
      %1085 = vmatpush.bf16.xpose.msra.mxu0 0
      %1086 = vmatpush.bf16.xpose.msra.mxu0 0
      %1087 = vmatpush.bf16.xpose.msra.mxu0 0
      %1088 = vmatpush.bf16.xpose.msra.mxu0 0
      %1089 = vmatpush.bf16.xpose.msra.mxu0 0
      %1090 = vmatpush.bf16.xpose.msra.mxu0 0
      %1091 = vmatpush.bf16.xpose.msra.mxu0 %v1082
      %1092 = vmatmul.bf16.gmra.mxu0 %v1079
      %v1093 = vpop.f32.mrf.mxu0
      %v1094 = vadd.f32 0.0, %v1093
      %v1095 = vpop.f32.mrf.mxu0
      %v1096 = vadd.f32 0.0, %v1095
      %1097 = vdwg.mxu0
      %v1098 = vunpack.c.l.b16 %v803
      %v1099 = vunpack.c.l.b16 %v805
      %v1100 = vpack.c.b16 %v1099, %v1098
      %1101 = vrot.lane.b32.xlu0 %v1100, 96
      %v1102 = vpop.permute.xlu0 %1101
      %v1104 = vsel %vm827, %v1100, 0
      %v1107 = vsel %vm827, %v1102, 0
      %1109 = vmatpush.bf16.xpose.msra.mxu0 0
      %1110 = vmatpush.bf16.xpose.msra.mxu0 0
      %1111 = vmatpush.bf16.xpose.msra.mxu0 0
      %1112 = vmatpush.bf16.xpose.msra.mxu0 0
      %1113 = vmatpush.bf16.xpose.msra.mxu0 0
      %1114 = vmatpush.bf16.xpose.msra.mxu0 0
      %1115 = vmatpush.bf16.xpose.msra.mxu0 0
      %1116 = vmatpush.bf16.xpose.msra.mxu0 %v1107
      %1117 = vmatmul.bf16.gmra.mxu0 %v1104
      %v1118 = vpop.f32.mrf.mxu0
      %v1119 = vadd.f32 0.0, %v1118
      %v1120 = vpop.f32.mrf.mxu0
      %v1121 = vadd.f32 0.0, %v1120
      %1122 = vdwg.mxu0
      %v1123 = vunpack.c.l.b16 %v807
      %v1124 = vunpack.c.l.b16 %v809
      %v1125 = vpack.c.b16 %v1124, %v1123
      %1126 = vrot.lane.b32.xlu0 %v1125, 96
      %v1127 = vpop.permute.xlu0 %1126
      %v1129 = vsel %vm827, %v1125, 0
      %v1132 = vsel %vm827, %v1127, 0
      %1134 = vmatpush.bf16.xpose.msra.mxu0 0
      %1135 = vmatpush.bf16.xpose.msra.mxu0 0
      %1136 = vmatpush.bf16.xpose.msra.mxu0 0
      %1137 = vmatpush.bf16.xpose.msra.mxu0 0
      %1138 = vmatpush.bf16.xpose.msra.mxu0 0
      %1139 = vmatpush.bf16.xpose.msra.mxu0 0
      %1140 = vmatpush.bf16.xpose.msra.mxu0 0
      %1141 = vmatpush.bf16.xpose.msra.mxu0 %v1132
      %1142 = vmatmul.bf16.gmra.mxu0 %v1129
      %v1143 = vpop.f32.mrf.mxu0
      %v1144 = vadd.f32 0.0, %v1143
      %v1145 = vpop.f32.mrf.mxu0
      %v1146 = vadd.f32 0.0, %v1145
      %1147 = vdwg.mxu0
      %v1148 = vunpack.c.l.b16 %v811
      %v1149 = vunpack.c.l.b16 %v813
      %v1150 = vpack.c.b16 %v1149, %v1148
      %1151 = vrot.lane.b32.xlu0 %v1150, 96
      %v1152 = vpop.permute.xlu0 %1151
      %v1154 = vsel %vm827, %v1150, 0
      %v1157 = vsel %vm827, %v1152, 0
      %1159 = vmatpush.bf16.xpose.msra.mxu0 0
      %1160 = vmatpush.bf16.xpose.msra.mxu0 0
      %1161 = vmatpush.bf16.xpose.msra.mxu0 0
      %1162 = vmatpush.bf16.xpose.msra.mxu0 0
      %1163 = vmatpush.bf16.xpose.msra.mxu0 0
      %1164 = vmatpush.bf16.xpose.msra.mxu0 0
      %1165 = vmatpush.bf16.xpose.msra.mxu0 0
      %1166 = vmatpush.bf16.xpose.msra.mxu0 %v1157
      %1167 = vmatmul.bf16.gmra.mxu0 %v1154
      %v1168 = vpop.f32.mrf.mxu0
      %v1169 = vadd.f32 0.0, %v1168
      %v1170 = vpop.f32.mrf.mxu0
      %v1171 = vadd.f32 0.0, %v1170
      %1172 = vdwg.mxu0
      %v1173 = vunpack.c.l.b16 %v815
      %v1174 = vunpack.c.l.b16 %v817
      %v1175 = vpack.c.b16 %v1174, %v1173
      %1176 = vrot.lane.b32.xlu0 %v1175, 96
      %v1177 = vpop.permute.xlu0 %1176
      %v1179 = vsel %vm827, %v1175, 0
      %v1182 = vsel %vm827, %v1177, 0
      %1184 = vmatpush.bf16.xpose.msra.mxu0 0
      %1185 = vmatpush.bf16.xpose.msra.mxu0 0
      %1186 = vmatpush.bf16.xpose.msra.mxu0 0
      %1187 = vmatpush.bf16.xpose.msra.mxu0 0
      %1188 = vmatpush.bf16.xpose.msra.mxu0 0
      %1189 = vmatpush.bf16.xpose.msra.mxu0 0
      %1190 = vmatpush.bf16.xpose.msra.mxu0 0
      %1191 = vmatpush.bf16.xpose.msra.mxu0 %v1182
      %1192 = vmatmul.bf16.gmra.mxu0 %v1179
      %v1193 = vpop.f32.mrf.mxu0
      %v1194 = vadd.f32 0.0, %v1193
      %v1195 = vpop.f32.mrf.mxu0
      %v1196 = vadd.f32 0.0, %v1195
      %1197 = vdwg.mxu0
      %v1198 = vunpack.c.l.b16 %v819
      %v1199 = vunpack.c.l.b16 %v821
      %v1200 = vpack.c.b16 %v1199, %v1198
      %1201 = vrot.lane.b32.xlu0 %v1200, 96
      %v1202 = vpop.permute.xlu0 %1201
      %v1204 = vsel %vm827, %v1200, 0
      %v1207 = vsel %vm827, %v1202, 0
      %1209 = vmatpush.bf16.xpose.msra.mxu0 0
      %1210 = vmatpush.bf16.xpose.msra.mxu0 0
      %1211 = vmatpush.bf16.xpose.msra.mxu0 0
      %1212 = vmatpush.bf16.xpose.msra.mxu0 0
      %1213 = vmatpush.bf16.xpose.msra.mxu0 0
      %1214 = vmatpush.bf16.xpose.msra.mxu0 0
      %1215 = vmatpush.bf16.xpose.msra.mxu0 0
      %1216 = vmatpush.bf16.xpose.msra.mxu0 %v1207
      %1217 = vmatmul.bf16.gmra.mxu0 %v1204
      %v1218 = vpop.f32.mrf.mxu0
      %v1219 = vadd.f32 0.0, %v1218
      %v1220 = vpop.f32.mrf.mxu0
      %v1221 = vadd.f32 0.0, %v1220
      %1222 = vdwg.mxu0
      %v1223 = vld [vmem:[%s1] sm:$0xff]
      %v1224 = vld [vmem:[%s1 + $0x8] sm:$0xff]
      %v1225 = vld [vmem:[%s1 + $0x10] sm:$0xff]
      %v1226 = vld [vmem:[%s1 + $0x18] sm:$0xff]
      %v1227 = vld [vmem:[%s1 + $0x20] sm:$0xff]
      %v1228 = vld [vmem:[%s1 + $0x28] sm:$0xff]
      %v1229 = vld [vmem:[%s1 + $0x30] sm:$0xff]
      %v1230 = vld [vmem:[%s1 + $0x38] sm:$0xff]
      %v1231 = vld [vmem:[%s1 + $0x40] sm:$0xff]
      %v1232 = vld [vmem:[%s1 + $0x48] sm:$0xff]
      %v1233 = vld [vmem:[%s1 + $0x50] sm:$0xff]
      %v1234 = vld [vmem:[%s1 + $0x58] sm:$0xff]
      %v1235 = vld [vmem:[%s1 + $0x60] sm:$0xff]
      %v1236 = vld [vmem:[%s1 + $0x68] sm:$0xff]
      %v1237 = vld [vmem:[%s1 + $0x70] sm:$0xff]
      %v1238 = vld [vmem:[%s1 + $0x78] sm:$0xff]
      %v1239 = vld [vmem:[%s1 + $0x80] sm:$0xff]
      %v1240 = vld [vmem:[%s1 + $0x88] sm:$0xff]
      %v1241 = vld [vmem:[%s1 + $0x90] sm:$0xff]
      %v1242 = vld [vmem:[%s1 + $0x98] sm:$0xff]
      %v1243 = vld [vmem:[%s1 + $0xa0] sm:$0xff]
      %v1244 = vld [vmem:[%s1 + $0xa8] sm:$0xff]
      %v1245 = vld [vmem:[%s1 + $0xb0] sm:$0xff]
      %v1246 = vld [vmem:[%s1 + $0xb8] sm:$0xff]
      %v1247 = vld [vmem:[%s1 + $0xc0] sm:$0xff]
      %v1248 = vld [vmem:[%s1 + $0xc8] sm:$0xff]
      %v1249 = vld [vmem:[%s1 + $0xd0] sm:$0xff]
      %v1250 = vld [vmem:[%s1 + $0xd8] sm:$0xff]
      %v1251 = vld [vmem:[%s1 + $0xe0] sm:$0xff]
      %v1252 = vld [vmem:[%s1 + $0xe8] sm:$0xff]
      %v1253 = vld [vmem:[%s1 + $0xf0] sm:$0xff]
      %v1254 = vld [vmem:[%s1 + $0xf8] sm:$0xff]
      %v1255 = vadd.f32 %v844, %v1223
      %v1256 = vadd.f32 %v846, %v1224
      %v1257 = vadd.f32 %v869, %v1225
      %v1258 = vadd.f32 %v871, %v1226
      %v1259 = vadd.f32 %v894, %v1227
      %v1260 = vadd.f32 %v896, %v1228
      %v1261 = vadd.f32 %v919, %v1229
      %v1262 = vadd.f32 %v921, %v1230
      %v1263 = vadd.f32 %v944, %v1231
      %v1264 = vadd.f32 %v946, %v1232
      %v1265 = vadd.f32 %v969, %v1233
      %v1266 = vadd.f32 %v971, %v1234
      %v1267 = vadd.f32 %v994, %v1235
      %v1268 = vadd.f32 %v996, %v1236
      %v1269 = vadd.f32 %v1019, %v1237
      %v1270 = vadd.f32 %v1021, %v1238
      %v1271 = vadd.f32 %v1044, %v1239
      %v1272 = vadd.f32 %v1046, %v1240
      %v1273 = vadd.f32 %v1069, %v1241
      %v1274 = vadd.f32 %v1071, %v1242
      %v1275 = vadd.f32 %v1094, %v1243
      %v1276 = vadd.f32 %v1096, %v1244
      %v1277 = vadd.f32 %v1119, %v1245
      %v1278 = vadd.f32 %v1121, %v1246
      %v1279 = vadd.f32 %v1144, %v1247
      %v1280 = vadd.f32 %v1146, %v1248
      %v1281 = vadd.f32 %v1169, %v1249
      %v1282 = vadd.f32 %v1171, %v1250
      %v1283 = vadd.f32 %v1194, %v1251
      %v1284 = vadd.f32 %v1196, %v1252
      %v1285 = vadd.f32 %v1219, %v1253
      %v1286 = vadd.f32 %v1221, %v1254
      %vm1287 = vcmask 130048
      %v1288 = vsel %vm1287, %v1255, -inf
      %1289 = vmax.xlane.f32.xlu0 %v1288
      %v1290 = vpop.xlane.xlu0 %1289
      %v1291 = vsel %vm1287, %v1256, -inf
      %1292 = vmax.xlane.f32.xlu0 %v1291
      %v1293 = vpop.xlane.xlu0 %1292
      %v1294 = vsel %vm1287, %v1257, -inf
      %1295 = vmax.xlane.f32.xlu0 %v1294
      %v1296 = vpop.xlane.xlu0 %1295
      %v1297 = vsel %vm1287, %v1258, -inf
      %1298 = vmax.xlane.f32.xlu0 %v1297
      %v1299 = vpop.xlane.xlu0 %1298
      %v1300 = vsel %vm1287, %v1259, -inf
      %1301 = vmax.xlane.f32.xlu0 %v1300
      %v1302 = vpop.xlane.xlu0 %1301
      %v1303 = vsel %vm1287, %v1260, -inf
      %1304 = vmax.xlane.f32.xlu0 %v1303
      %v1305 = vpop.xlane.xlu0 %1304
      %v1306 = vsel %vm1287, %v1261, -inf
      %1307 = vmax.xlane.f32.xlu0 %v1306
      %v1308 = vpop.xlane.xlu0 %1307
      %v1309 = vsel %vm1287, %v1262, -inf
      %1310 = vmax.xlane.f32.xlu0 %v1309
      %v1311 = vpop.xlane.xlu0 %1310
      %v1312 = vsel %vm1287, %v1263, -inf
      %1313 = vmax.xlane.f32.xlu0 %v1312
      %v1314 = vpop.xlane.xlu0 %1313
      %v1315 = vsel %vm1287, %v1264, -inf
      %1316 = vmax.xlane.f32.xlu0 %v1315
      %v1317 = vpop.xlane.xlu0 %1316
      %v1318 = vsel %vm1287, %v1265, -inf
      %1319 = vmax.xlane.f32.xlu0 %v1318
      %v1320 = vpop.xlane.xlu0 %1319
      %v1321 = vsel %vm1287, %v1266, -inf
      %1322 = vmax.xlane.f32.xlu0 %v1321
      %v1323 = vpop.xlane.xlu0 %1322
      %v1324 = vsel %vm1287, %v1267, -inf
      %1325 = vmax.xlane.f32.xlu0 %v1324
      %v1326 = vpop.xlane.xlu0 %1325
      %v1327 = vsel %vm1287, %v1268, -inf
      %1328 = vmax.xlane.f32.xlu0 %v1327
      %v1329 = vpop.xlane.xlu0 %1328
      %v1330 = vsel %vm1287, %v1269, -inf
      %1331 = vmax.xlane.f32.xlu0 %v1330
      %v1332 = vpop.xlane.xlu0 %1331
      %v1333 = vsel %vm1287, %v1270, -inf
      %1334 = vmax.xlane.f32.xlu0 %v1333
      %v1335 = vpop.xlane.xlu0 %1334
      %v1336 = vsel %vm1287, %v1271, -inf
      %1337 = vmax.xlane.f32.xlu0 %v1336
      %v1338 = vpop.xlane.xlu0 %1337
      %v1339 = vsel %vm1287, %v1272, -inf
      %1340 = vmax.xlane.f32.xlu0 %v1339
      %v1341 = vpop.xlane.xlu0 %1340
      %v1342 = vsel %vm1287, %v1273, -inf
      %1343 = vmax.xlane.f32.xlu0 %v1342
      %v1344 = vpop.xlane.xlu0 %1343
      %v1345 = vsel %vm1287, %v1274, -inf
      %1346 = vmax.xlane.f32.xlu0 %v1345
      %v1347 = vpop.xlane.xlu0 %1346
      %v1348 = vsel %vm1287, %v1275, -inf
      %1349 = vmax.xlane.f32.xlu0 %v1348
      %v1350 = vpop.xlane.xlu0 %1349
      %v1351 = vsel %vm1287, %v1276, -inf
      %1352 = vmax.xlane.f32.xlu0 %v1351
      %v1353 = vpop.xlane.xlu0 %1352
      %v1354 = vsel %vm1287, %v1277, -inf
      %1355 = vmax.xlane.f32.xlu0 %v1354
      %v1356 = vpop.xlane.xlu0 %1355
      %v1357 = vsel %vm1287, %v1278, -inf
      %1358 = vmax.xlane.f32.xlu0 %v1357
      %v1359 = vpop.xlane.xlu0 %1358
      %v1360 = vsel %vm1287, %v1279, -inf
      %1361 = vmax.xlane.f32.xlu0 %v1360
      %v1362 = vpop.xlane.xlu0 %1361
      %v1363 = vsel %vm1287, %v1280, -inf
      %1364 = vmax.xlane.f32.xlu0 %v1363
      %v1365 = vpop.xlane.xlu0 %1364
      %v1366 = vsel %vm1287, %v1281, -inf
      %1367 = vmax.xlane.f32.xlu0 %v1366
      %v1368 = vpop.xlane.xlu0 %1367
      %v1369 = vsel %vm1287, %v1282, -inf
      %1370 = vmax.xlane.f32.xlu0 %v1369
      %v1371 = vpop.xlane.xlu0 %1370
      %v1372 = vsel %vm1287, %v1283, -inf
      %1373 = vmax.xlane.f32.xlu0 %v1372
      %v1374 = vpop.xlane.xlu0 %1373
      %v1375 = vsel %vm1287, %v1284, -inf
      %1376 = vmax.xlane.f32.xlu0 %v1375
      %v1377 = vpop.xlane.xlu0 %1376
      %v1378 = vsel %vm1287, %v1285, -inf
      %1379 = vmax.xlane.f32.xlu0 %v1378
      %v1380 = vpop.xlane.xlu0 %1379
      %v1381 = vsel %vm1287, %v1286, -inf
      %1382 = vmax.xlane.f32.xlu0 %v1381
      %v1383 = vpop.xlane.xlu0 %1382
      %v1384 = vsub.f32 %v1255, %v1290
      %v1385 = vsub.f32 %v1256, %v1293
      %v1386 = vsub.f32 %v1257, %v1296
      %v1387 = vsub.f32 %v1258, %v1299
      %v1388 = vsub.f32 %v1259, %v1302
      %v1389 = vsub.f32 %v1260, %v1305
      %v1390 = vsub.f32 %v1261, %v1308
      %v1391 = vsub.f32 %v1262, %v1311
      %v1392 = vsub.f32 %v1263, %v1314
      %v1393 = vsub.f32 %v1264, %v1317
      %v1394 = vsub.f32 %v1265, %v1320
      %v1395 = vsub.f32 %v1266, %v1323
      %v1396 = vsub.f32 %v1267, %v1326
      %v1397 = vsub.f32 %v1268, %v1329
      %v1398 = vsub.f32 %v1269, %v1332
      %v1399 = vsub.f32 %v1270, %v1335
      %v1400 = vsub.f32 %v1271, %v1338
      %v1401 = vsub.f32 %v1272, %v1341
      %v1402 = vsub.f32 %v1273, %v1344
      %v1403 = vsub.f32 %v1274, %v1347
      %v1404 = vsub.f32 %v1275, %v1350
      %v1405 = vsub.f32 %v1276, %v1353
      %v1406 = vsub.f32 %v1277, %v1356
      %v1407 = vsub.f32 %v1278, %v1359
      %v1408 = vsub.f32 %v1279, %v1362
      %v1409 = vsub.f32 %v1280, %v1365
      %v1410 = vsub.f32 %v1281, %v1368
      %v1411 = vsub.f32 %v1282, %v1371
      %v1412 = vsub.f32 %v1283, %v1374
      %v1413 = vsub.f32 %v1284, %v1377
      %v1414 = vsub.f32 %v1285, %v1380
      %v1415 = vsub.f32 %v1286, %v1383
      %v1416 = vmul.f32 %v1384, 1.442695
      %v1417 = vpow.pop %v1416
      %v1418 = vmul.f32 %v1385, 1.442695
      %v1419 = vpow.pop %v1418
      %v1420 = vmul.f32 %v1386, 1.442695
      %v1421 = vpow.pop %v1420
      %v1422 = vmul.f32 %v1387, 1.442695
      %v1423 = vpow.pop %v1422
      %v1424 = vmul.f32 %v1388, 1.442695
      %v1425 = vpow.pop %v1424
      %v1426 = vmul.f32 %v1389, 1.442695
      %v1427 = vpow.pop %v1426
      %v1428 = vmul.f32 %v1390, 1.442695
      %v1429 = vpow.pop %v1428
      %v1430 = vmul.f32 %v1391, 1.442695
      %v1431 = vpow.pop %v1430
      %v1432 = vmul.f32 %v1392, 1.442695
      %v1433 = vpow.pop %v1432
      %v1434 = vmul.f32 %v1393, 1.442695
      %v1435 = vpow.pop %v1434
      %v1436 = vmul.f32 %v1394, 1.442695
      %v1437 = vpow.pop %v1436
      %v1438 = vmul.f32 %v1395, 1.442695
      %v1439 = vpow.pop %v1438
      %v1440 = vmul.f32 %v1396, 1.442695
      %v1441 = vpow.pop %v1440
      %v1442 = vmul.f32 %v1397, 1.442695
      %v1443 = vpow.pop %v1442
      %v1444 = vmul.f32 %v1398, 1.442695
      %v1445 = vpow.pop %v1444
      %v1446 = vmul.f32 %v1399, 1.442695
      %v1447 = vpow.pop %v1446
      %v1448 = vmul.f32 %v1400, 1.442695
      %v1449 = vpow.pop %v1448
      %v1450 = vmul.f32 %v1401, 1.442695
      %v1451 = vpow.pop %v1450
      %v1452 = vmul.f32 %v1402, 1.442695
      %v1453 = vpow.pop %v1452
      %v1454 = vmul.f32 %v1403, 1.442695
      %v1455 = vpow.pop %v1454
      %v1456 = vmul.f32 %v1404, 1.442695
      %v1457 = vpow.pop %v1456
      %v1458 = vmul.f32 %v1405, 1.442695
      %v1459 = vpow.pop %v1458
      %v1460 = vmul.f32 %v1406, 1.442695
      %v1461 = vpow.pop %v1460
      %v1462 = vmul.f32 %v1407, 1.442695
      %v1463 = vpow.pop %v1462
      %v1464 = vmul.f32 %v1408, 1.442695
      %v1465 = vpow.pop %v1464
      %v1466 = vmul.f32 %v1409, 1.442695
      %v1467 = vpow.pop %v1466
      %v1468 = vmul.f32 %v1410, 1.442695
      %v1469 = vpow.pop %v1468
      %v1470 = vmul.f32 %v1411, 1.442695
      %v1471 = vpow.pop %v1470
      %v1472 = vmul.f32 %v1412, 1.442695
      %v1473 = vpow.pop %v1472
      %v1474 = vmul.f32 %v1413, 1.442695
      %v1475 = vpow.pop %v1474
      %v1476 = vmul.f32 %v1414, 1.442695
      %v1477 = vpow.pop %v1476
      %v1478 = vmul.f32 %v1415, 1.442695
      %v1479 = vpow.pop %v1478
      %v1480 = vsel %vm1287, %v1417, 0.0
      %1481 = vadd.xlane.f32.xlu0 %v1480
      %v1482 = vpop.xlane.xlu0 %1481
      %v1483 = vsel %vm1287, %v1419, 0.0
      %1484 = vadd.xlane.f32.xlu0 %v1483
      %v1485 = vpop.xlane.xlu0 %1484
      %v1486 = vsel %vm1287, %v1421, 0.0
      %1487 = vadd.xlane.f32.xlu0 %v1486
      %v1488 = vpop.xlane.xlu0 %1487
      %v1489 = vsel %vm1287, %v1423, 0.0
      %1490 = vadd.xlane.f32.xlu0 %v1489
      %v1491 = vpop.xlane.xlu0 %1490
      %v1492 = vsel %vm1287, %v1425, 0.0
      %1493 = vadd.xlane.f32.xlu0 %v1492
      %v1494 = vpop.xlane.xlu0 %1493
      %v1495 = vsel %vm1287, %v1427, 0.0
      %1496 = vadd.xlane.f32.xlu0 %v1495
      %v1497 = vpop.xlane.xlu0 %1496
      %v1498 = vsel %vm1287, %v1429, 0.0
      %1499 = vadd.xlane.f32.xlu0 %v1498
      %v1500 = vpop.xlane.xlu0 %1499
      %v1501 = vsel %vm1287, %v1431, 0.0
      %1502 = vadd.xlane.f32.xlu0 %v1501
      %v1503 = vpop.xlane.xlu0 %1502
      %v1504 = vsel %vm1287, %v1433, 0.0
      %1505 = vadd.xlane.f32.xlu0 %v1504
      %v1506 = vpop.xlane.xlu0 %1505
      %v1507 = vsel %vm1287, %v1435, 0.0
      %1508 = vadd.xlane.f32.xlu0 %v1507
      %v1509 = vpop.xlane.xlu0 %1508
      %v1510 = vsel %vm1287, %v1437, 0.0
      %1511 = vadd.xlane.f32.xlu0 %v1510
      %v1512 = vpop.xlane.xlu0 %1511
      %v1513 = vsel %vm1287, %v1439, 0.0
      %1514 = vadd.xlane.f32.xlu0 %v1513
      %v1515 = vpop.xlane.xlu0 %1514
      %v1516 = vsel %vm1287, %v1441, 0.0
      %1517 = vadd.xlane.f32.xlu0 %v1516
      %v1518 = vpop.xlane.xlu0 %1517
      %v1519 = vsel %vm1287, %v1443, 0.0
      %1520 = vadd.xlane.f32.xlu0 %v1519
      %v1521 = vpop.xlane.xlu0 %1520
      %v1522 = vsel %vm1287, %v1445, 0.0
      %1523 = vadd.xlane.f32.xlu0 %v1522
      %v1524 = vpop.xlane.xlu0 %1523
      %v1525 = vsel %vm1287, %v1447, 0.0
      %1526 = vadd.xlane.f32.xlu0 %v1525
      %v1527 = vpop.xlane.xlu0 %1526
      %v1528 = vsel %vm1287, %v1449, 0.0
      %1529 = vadd.xlane.f32.xlu0 %v1528
      %v1530 = vpop.xlane.xlu0 %1529
      %v1531 = vsel %vm1287, %v1451, 0.0
      %1532 = vadd.xlane.f32.xlu0 %v1531
      %v1533 = vpop.xlane.xlu0 %1532
      %v1534 = vsel %vm1287, %v1453, 0.0
      %1535 = vadd.xlane.f32.xlu0 %v1534
      %v1536 = vpop.xlane.xlu0 %1535
      %v1537 = vsel %vm1287, %v1455, 0.0
      %1538 = vadd.xlane.f32.xlu0 %v1537
      %v1539 = vpop.xlane.xlu0 %1538
      %v1540 = vsel %vm1287, %v1457, 0.0
      %1541 = vadd.xlane.f32.xlu0 %v1540
      %v1542 = vpop.xlane.xlu0 %1541
      %v1543 = vsel %vm1287, %v1459, 0.0
      %1544 = vadd.xlane.f32.xlu0 %v1543
      %v1545 = vpop.xlane.xlu0 %1544
      %v1546 = vsel %vm1287, %v1461, 0.0
      %1547 = vadd.xlane.f32.xlu0 %v1546
      %v1548 = vpop.xlane.xlu0 %1547
      %v1549 = vsel %vm1287, %v1463, 0.0
      %1550 = vadd.xlane.f32.xlu0 %v1549
      %v1551 = vpop.xlane.xlu0 %1550
      %v1552 = vsel %vm1287, %v1465, 0.0
      %1553 = vadd.xlane.f32.xlu0 %v1552
      %v1554 = vpop.xlane.xlu0 %1553
      %v1555 = vsel %vm1287, %v1467, 0.0
      %1556 = vadd.xlane.f32.xlu0 %v1555
      %v1557 = vpop.xlane.xlu0 %1556
      %v1558 = vsel %vm1287, %v1469, 0.0
      %1559 = vadd.xlane.f32.xlu0 %v1558
      %v1560 = vpop.xlane.xlu0 %1559
      %v1561 = vsel %vm1287, %v1471, 0.0
      %1562 = vadd.xlane.f32.xlu0 %v1561
      %v1563 = vpop.xlane.xlu0 %1562
      %v1564 = vsel %vm1287, %v1473, 0.0
      %1565 = vadd.xlane.f32.xlu0 %v1564
      %v1566 = vpop.xlane.xlu0 %1565
      %v1567 = vsel %vm1287, %v1475, 0.0
      %1568 = vadd.xlane.f32.xlu0 %v1567
      %v1569 = vpop.xlane.xlu0 %1568
      %v1570 = vsel %vm1287, %v1477, 0.0
      %1571 = vadd.xlane.f32.xlu0 %v1570
      %v1572 = vpop.xlane.xlu0 %1571
      %v1573 = vsel %vm1287, %v1479, 0.0
      %1574 = vadd.xlane.f32.xlu0 %v1573
      %v1575 = vpop.xlane.xlu0 %1574
      %v1576 = vrcp.pop %v1482
      %v1577 = vrcp.pop %v1485
      %v1578 = vrcp.pop %v1488
      %v1579 = vrcp.pop %v1491
      %v1580 = vrcp.pop %v1494
      %v1581 = vrcp.pop %v1497
      %v1582 = vrcp.pop %v1500
      %v1583 = vrcp.pop %v1503
      %v1584 = vrcp.pop %v1506
      %v1585 = vrcp.pop %v1509
      %v1586 = vrcp.pop %v1512
      %v1587 = vrcp.pop %v1515
      %v1588 = vrcp.pop %v1518
      %v1589 = vrcp.pop %v1521
      %v1590 = vrcp.pop %v1524
      %v1591 = vrcp.pop %v1527
      %v1592 = vrcp.pop %v1530
      %v1593 = vrcp.pop %v1533
      %v1594 = vrcp.pop %v1536
      %v1595 = vrcp.pop %v1539
      %v1596 = vrcp.pop %v1542
      %v1597 = vrcp.pop %v1545
      %v1598 = vrcp.pop %v1548
      %v1599 = vrcp.pop %v1551
      %v1600 = vrcp.pop %v1554
      %v1601 = vrcp.pop %v1557
      %v1602 = vrcp.pop %v1560
      %v1603 = vrcp.pop %v1563
      %v1604 = vrcp.pop %v1566
      %v1605 = vrcp.pop %v1569
      %v1606 = vrcp.pop %v1572
      %v1607 = vrcp.pop %v1575
      %v1608 = vmul.f32 %v1417, %v1576
      %v1609 = vmul.f32 %v1419, %v1577
      %v1610 = vmul.f32 %v1421, %v1578
      %v1611 = vmul.f32 %v1423, %v1579
      %v1612 = vmul.f32 %v1425, %v1580
      %v1613 = vmul.f32 %v1427, %v1581
      %v1614 = vmul.f32 %v1429, %v1582
      %v1615 = vmul.f32 %v1431, %v1583
      %v1616 = vmul.f32 %v1433, %v1584
      %v1617 = vmul.f32 %v1435, %v1585
      %v1618 = vmul.f32 %v1437, %v1586
      %v1619 = vmul.f32 %v1439, %v1587
      %v1620 = vmul.f32 %v1441, %v1588
      %v1621 = vmul.f32 %v1443, %v1589
      %v1622 = vmul.f32 %v1445, %v1590
      %v1623 = vmul.f32 %v1447, %v1591
      %v1624 = vmul.f32 %v1449, %v1592
      %v1625 = vmul.f32 %v1451, %v1593
      %v1626 = vmul.f32 %v1453, %v1594
      %v1627 = vmul.f32 %v1455, %v1595
      %v1628 = vmul.f32 %v1457, %v1596
      %v1629 = vmul.f32 %v1459, %v1597
      %v1630 = vmul.f32 %v1461, %v1598
      %v1631 = vmul.f32 %v1463, %v1599
      %v1632 = vmul.f32 %v1465, %v1600
      %v1633 = vmul.f32 %v1467, %v1601
      %v1634 = vmul.f32 %v1469, %v1602
      %v1635 = vmul.f32 %v1471, %v1603
      %v1636 = vmul.f32 %v1473, %v1604
      %v1637 = vmul.f32 %v1475, %v1605
      %v1638 = vmul.f32 %v1477, %v1606
      %v1639 = vmul.f32 %v1479, %v1607
      %v1640 = vpack.c.bf16 %v1608, %v1608
      %v1641 = vpack.c.bf16 %v1609, %v1609
      %v1642 = vpack.c.bf16 %v1610, %v1610
      %v1643 = vpack.c.bf16 %v1611, %v1611
      %v1644 = vpack.c.bf16 %v1612, %v1612
      %v1645 = vpack.c.bf16 %v1613, %v1613
      %v1646 = vpack.c.bf16 %v1614, %v1614
      %v1647 = vpack.c.bf16 %v1615, %v1615
      %v1648 = vpack.c.bf16 %v1616, %v1616
      %v1649 = vpack.c.bf16 %v1617, %v1617
      %v1650 = vpack.c.bf16 %v1618, %v1618
      %v1651 = vpack.c.bf16 %v1619, %v1619
      %v1652 = vpack.c.bf16 %v1620, %v1620
      %v1653 = vpack.c.bf16 %v1621, %v1621
      %v1654 = vpack.c.bf16 %v1622, %v1622
      %v1655 = vpack.c.bf16 %v1623, %v1623
      %v1656 = vpack.c.bf16 %v1624, %v1624
      %v1657 = vpack.c.bf16 %v1625, %v1625
      %v1658 = vpack.c.bf16 %v1626, %v1626
      %v1659 = vpack.c.bf16 %v1627, %v1627
      %v1660 = vpack.c.bf16 %v1628, %v1628
      %v1661 = vpack.c.bf16 %v1629, %v1629
      %v1662 = vpack.c.bf16 %v1630, %v1630
      %v1663 = vpack.c.bf16 %v1631, %v1631
      %v1664 = vpack.c.bf16 %v1632, %v1632
      %v1665 = vpack.c.bf16 %v1633, %v1633
      %v1666 = vpack.c.bf16 %v1634, %v1634
      %v1667 = vpack.c.bf16 %v1635, %v1635
      %v1668 = vpack.c.bf16 %v1636, %v1636
      %v1669 = vpack.c.bf16 %v1637, %v1637
      %v1670 = vpack.c.bf16 %v1638, %v1638
      %v1671 = vpack.c.bf16 %v1639, %v1639
      %v1674 = vunpack.c.l.b16 %v1640
      %v1675 = vunpack.c.l.b16 %v1641
      %v1676 = vpack.c.b16 %v1675, %v1674
      %1677 = vrot.lane.b32.xlu0 %v824, 64
      %v1678 = vpop.permute.xlu0 %1677
      %v1681 = vsel %vm1287, %v1676, 0
      %1683 = vmatpush.bf16.msra.mxu0 0
      %1684 = vmatpush.bf16.msra.mxu0 0
      %1685 = vmatpush.bf16.msra.mxu0 0
      %1686 = vmatpush.bf16.msra.mxu0 0
      %1687 = vmatpush.bf16.msra.mxu0 0
      %1688 = vmatpush.bf16.msra.mxu0 0
      %1689 = vmatpush.bf16.msra.mxu0 0
      %1690 = vmatpush.bf16.msra.mxu0 %v1678
      %1691 = vmatmul.bf16.gmra.mxu0 %v1681
      %v1692 = vpop.f32.mrf.mxu0
      %v1693 = vadd.f32 0.0, %v1692
      %v1694 = vpop.f32.mrf.mxu0
      %v1695 = vadd.f32 0.0, %v1694
      %1696 = vdwg.mxu0
      %v1699 = vunpack.c.l.b16 %v1642
      %v1700 = vunpack.c.l.b16 %v1643
      %v1701 = vpack.c.b16 %v1700, %v1699
      %1702 = vrot.lane.b32.xlu0 %v850, 64
      %v1703 = vpop.permute.xlu0 %1702
      %v1706 = vsel %vm1287, %v1701, 0
      %1708 = vmatpush.bf16.msra.mxu0 0
      %1709 = vmatpush.bf16.msra.mxu0 0
      %1710 = vmatpush.bf16.msra.mxu0 0
      %1711 = vmatpush.bf16.msra.mxu0 0
      %1712 = vmatpush.bf16.msra.mxu0 0
      %1713 = vmatpush.bf16.msra.mxu0 0
      %1714 = vmatpush.bf16.msra.mxu0 0
      %1715 = vmatpush.bf16.msra.mxu0 %v1703
      %1716 = vmatmul.bf16.gmra.mxu0 %v1706
      %v1717 = vpop.f32.mrf.mxu0
      %v1718 = vadd.f32 0.0, %v1717
      %v1719 = vpop.f32.mrf.mxu0
      %v1720 = vadd.f32 0.0, %v1719
      %1721 = vdwg.mxu0
      %v1724 = vunpack.c.l.b16 %v1644
      %v1725 = vunpack.c.l.b16 %v1645
      %v1726 = vpack.c.b16 %v1725, %v1724
      %1727 = vrot.lane.b32.xlu0 %v875, 64
      %v1728 = vpop.permute.xlu0 %1727
      %v1731 = vsel %vm1287, %v1726, 0
      %1733 = vmatpush.bf16.msra.mxu0 0
      %1734 = vmatpush.bf16.msra.mxu0 0
      %1735 = vmatpush.bf16.msra.mxu0 0
      %1736 = vmatpush.bf16.msra.mxu0 0
      %1737 = vmatpush.bf16.msra.mxu0 0
      %1738 = vmatpush.bf16.msra.mxu0 0
      %1739 = vmatpush.bf16.msra.mxu0 0
      %1740 = vmatpush.bf16.msra.mxu0 %v1728
      %1741 = vmatmul.bf16.gmra.mxu0 %v1731
      %v1742 = vpop.f32.mrf.mxu0
      %v1743 = vadd.f32 0.0, %v1742
      %v1744 = vpop.f32.mrf.mxu0
      %v1745 = vadd.f32 0.0, %v1744
      %1746 = vdwg.mxu0
      %v1749 = vunpack.c.l.b16 %v1646
      %v1750 = vunpack.c.l.b16 %v1647
      %v1751 = vpack.c.b16 %v1750, %v1749
      %1752 = vrot.lane.b32.xlu0 %v900, 64
      %v1753 = vpop.permute.xlu0 %1752
      %v1756 = vsel %vm1287, %v1751, 0
      %1758 = vmatpush.bf16.msra.mxu0 0
      %1759 = vmatpush.bf16.msra.mxu0 0
      %1760 = vmatpush.bf16.msra.mxu0 0
      %1761 = vmatpush.bf16.msra.mxu0 0
      %1762 = vmatpush.bf16.msra.mxu0 0
      %1763 = vmatpush.bf16.msra.mxu0 0
      %1764 = vmatpush.bf16.msra.mxu0 0
      %1765 = vmatpush.bf16.msra.mxu0 %v1753
      %1766 = vmatmul.bf16.gmra.mxu0 %v1756
      %v1767 = vpop.f32.mrf.mxu0
      %v1768 = vadd.f32 0.0, %v1767
      %v1769 = vpop.f32.mrf.mxu0
      %v1770 = vadd.f32 0.0, %v1769
      %1771 = vdwg.mxu0
      %v1774 = vunpack.c.l.b16 %v1648
      %v1775 = vunpack.c.l.b16 %v1649
      %v1776 = vpack.c.b16 %v1775, %v1774
      %1777 = vrot.lane.b32.xlu0 %v925, 64
      %v1778 = vpop.permute.xlu0 %1777
      %v1781 = vsel %vm1287, %v1776, 0
      %1783 = vmatpush.bf16.msra.mxu0 0
      %1784 = vmatpush.bf16.msra.mxu0 0
      %1785 = vmatpush.bf16.msra.mxu0 0
      %1786 = vmatpush.bf16.msra.mxu0 0
      %1787 = vmatpush.bf16.msra.mxu0 0
      %1788 = vmatpush.bf16.msra.mxu0 0
      %1789 = vmatpush.bf16.msra.mxu0 0
      %1790 = vmatpush.bf16.msra.mxu0 %v1778
      %1791 = vmatmul.bf16.gmra.mxu0 %v1781
      %v1792 = vpop.f32.mrf.mxu0
      %v1793 = vadd.f32 0.0, %v1792
      %v1794 = vpop.f32.mrf.mxu0
      %v1795 = vadd.f32 0.0, %v1794
      %1796 = vdwg.mxu0
      %v1799 = vunpack.c.l.b16 %v1650
      %v1800 = vunpack.c.l.b16 %v1651
      %v1801 = vpack.c.b16 %v1800, %v1799
      %1802 = vrot.lane.b32.xlu0 %v950, 64
      %v1803 = vpop.permute.xlu0 %1802
      %v1806 = vsel %vm1287, %v1801, 0
      %1808 = vmatpush.bf16.msra.mxu0 0
      %1809 = vmatpush.bf16.msra.mxu0 0
      %1810 = vmatpush.bf16.msra.mxu0 0
      %1811 = vmatpush.bf16.msra.mxu0 0
      %1812 = vmatpush.bf16.msra.mxu0 0
      %1813 = vmatpush.bf16.msra.mxu0 0
      %1814 = vmatpush.bf16.msra.mxu0 0
      %1815 = vmatpush.bf16.msra.mxu0 %v1803
      %1816 = vmatmul.bf16.gmra.mxu0 %v1806
      %v1817 = vpop.f32.mrf.mxu0
      %v1818 = vadd.f32 0.0, %v1817
      %v1819 = vpop.f32.mrf.mxu0
      %v1820 = vadd.f32 0.0, %v1819
      %1821 = vdwg.mxu0
      %v1824 = vunpack.c.l.b16 %v1652
      %v1825 = vunpack.c.l.b16 %v1653
      %v1826 = vpack.c.b16 %v1825, %v1824
      %1827 = vrot.lane.b32.xlu0 %v975, 64
      %v1828 = vpop.permute.xlu0 %1827
      %v1831 = vsel %vm1287, %v1826, 0
      %1833 = vmatpush.bf16.msra.mxu0 0
      %1834 = vmatpush.bf16.msra.mxu0 0
      %1835 = vmatpush.bf16.msra.mxu0 0
      %1836 = vmatpush.bf16.msra.mxu0 0
      %1837 = vmatpush.bf16.msra.mxu0 0
      %1838 = vmatpush.bf16.msra.mxu0 0
      %1839 = vmatpush.bf16.msra.mxu0 0
      %1840 = vmatpush.bf16.msra.mxu0 %v1828
      %1841 = vmatmul.bf16.gmra.mxu0 %v1831
      %v1842 = vpop.f32.mrf.mxu0
      %v1843 = vadd.f32 0.0, %v1842
      %v1844 = vpop.f32.mrf.mxu0
      %v1845 = vadd.f32 0.0, %v1844
      %1846 = vdwg.mxu0
      %v1849 = vunpack.c.l.b16 %v1654
      %v1850 = vunpack.c.l.b16 %v1655
      %v1851 = vpack.c.b16 %v1850, %v1849
      %1852 = vrot.lane.b32.xlu0 %v1000, 64
      %v1853 = vpop.permute.xlu0 %1852
      %v1856 = vsel %vm1287, %v1851, 0
      %1858 = vmatpush.bf16.msra.mxu0 0
      %1859 = vmatpush.bf16.msra.mxu0 0
      %1860 = vmatpush.bf16.msra.mxu0 0
      %1861 = vmatpush.bf16.msra.mxu0 0
      %1862 = vmatpush.bf16.msra.mxu0 0
      %1863 = vmatpush.bf16.msra.mxu0 0
      %1864 = vmatpush.bf16.msra.mxu0 0
      %1865 = vmatpush.bf16.msra.mxu0 %v1853
      %1866 = vmatmul.bf16.gmra.mxu0 %v1856
      %v1867 = vpop.f32.mrf.mxu0
      %v1868 = vadd.f32 0.0, %v1867
      %v1869 = vpop.f32.mrf.mxu0
      %v1870 = vadd.f32 0.0, %v1869
      %1871 = vdwg.mxu0
      %v1874 = vunpack.c.l.b16 %v1656
      %v1875 = vunpack.c.l.b16 %v1657
      %v1876 = vpack.c.b16 %v1875, %v1874
      %1877 = vrot.lane.b32.xlu0 %v1025, 64
      %v1878 = vpop.permute.xlu0 %1877
      %v1881 = vsel %vm1287, %v1876, 0
      %1883 = vmatpush.bf16.msra.mxu0 0
      %1884 = vmatpush.bf16.msra.mxu0 0
      %1885 = vmatpush.bf16.msra.mxu0 0
      %1886 = vmatpush.bf16.msra.mxu0 0
      %1887 = vmatpush.bf16.msra.mxu0 0
      %1888 = vmatpush.bf16.msra.mxu0 0
      %1889 = vmatpush.bf16.msra.mxu0 0
      %1890 = vmatpush.bf16.msra.mxu0 %v1878
      %1891 = vmatmul.bf16.gmra.mxu0 %v1881
      %v1892 = vpop.f32.mrf.mxu0
      %v1893 = vadd.f32 0.0, %v1892
      %v1894 = vpop.f32.mrf.mxu0
      %v1895 = vadd.f32 0.0, %v1894
      %1896 = vdwg.mxu0
      %v1899 = vunpack.c.l.b16 %v1658
      %v1900 = vunpack.c.l.b16 %v1659
      %v1901 = vpack.c.b16 %v1900, %v1899
      %1902 = vrot.lane.b32.xlu0 %v1050, 64
      %v1903 = vpop.permute.xlu0 %1902
      %v1906 = vsel %vm1287, %v1901, 0
      %1908 = vmatpush.bf16.msra.mxu0 0
      %1909 = vmatpush.bf16.msra.mxu0 0
      %1910 = vmatpush.bf16.msra.mxu0 0
      %1911 = vmatpush.bf16.msra.mxu0 0
      %1912 = vmatpush.bf16.msra.mxu0 0
      %1913 = vmatpush.bf16.msra.mxu0 0
      %1914 = vmatpush.bf16.msra.mxu0 0
      %1915 = vmatpush.bf16.msra.mxu0 %v1903
      %1916 = vmatmul.bf16.gmra.mxu0 %v1906
      %v1917 = vpop.f32.mrf.mxu0
      %v1918 = vadd.f32 0.0, %v1917
      %v1919 = vpop.f32.mrf.mxu0
      %v1920 = vadd.f32 0.0, %v1919
      %1921 = vdwg.mxu0
      %v1924 = vunpack.c.l.b16 %v1660
      %v1925 = vunpack.c.l.b16 %v1661
      %v1926 = vpack.c.b16 %v1925, %v1924
      %1927 = vrot.lane.b32.xlu0 %v1075, 64
      %v1928 = vpop.permute.xlu0 %1927
      %v1931 = vsel %vm1287, %v1926, 0
      %1933 = vmatpush.bf16.msra.mxu0 0
      %1934 = vmatpush.bf16.msra.mxu0 0
      %1935 = vmatpush.bf16.msra.mxu0 0
      %1936 = vmatpush.bf16.msra.mxu0 0
      %1937 = vmatpush.bf16.msra.mxu0 0
      %1938 = vmatpush.bf16.msra.mxu0 0
      %1939 = vmatpush.bf16.msra.mxu0 0
      %1940 = vmatpush.bf16.msra.mxu0 %v1928
      %1941 = vmatmul.bf16.gmra.mxu0 %v1931
      %v1942 = vpop.f32.mrf.mxu0
      %v1943 = vadd.f32 0.0, %v1942
      %v1944 = vpop.f32.mrf.mxu0
      %v1945 = vadd.f32 0.0, %v1944
      %1946 = vdwg.mxu0
      %v1949 = vunpack.c.l.b16 %v1662
      %v1950 = vunpack.c.l.b16 %v1663
      %v1951 = vpack.c.b16 %v1950, %v1949
      %1952 = vrot.lane.b32.xlu0 %v1100, 64
      %v1953 = vpop.permute.xlu0 %1952
      %v1956 = vsel %vm1287, %v1951, 0
      %1958 = vmatpush.bf16.msra.mxu0 0
      %1959 = vmatpush.bf16.msra.mxu0 0
      %1960 = vmatpush.bf16.msra.mxu0 0
      %1961 = vmatpush.bf16.msra.mxu0 0
      %1962 = vmatpush.bf16.msra.mxu0 0
      %1963 = vmatpush.bf16.msra.mxu0 0
      %1964 = vmatpush.bf16.msra.mxu0 0
      %1965 = vmatpush.bf16.msra.mxu0 %v1953
      %1966 = vmatmul.bf16.gmra.mxu0 %v1956
      %v1967 = vpop.f32.mrf.mxu0
      %v1968 = vadd.f32 0.0, %v1967
      %v1969 = vpop.f32.mrf.mxu0
      %v1970 = vadd.f32 0.0, %v1969
      %1971 = vdwg.mxu0
      %v1974 = vunpack.c.l.b16 %v1664
      %v1975 = vunpack.c.l.b16 %v1665
      %v1976 = vpack.c.b16 %v1975, %v1974
      %1977 = vrot.lane.b32.xlu0 %v1125, 64
      %v1978 = vpop.permute.xlu0 %1977
      %v1981 = vsel %vm1287, %v1976, 0
      %1983 = vmatpush.bf16.msra.mxu0 0
      %1984 = vmatpush.bf16.msra.mxu0 0
      %1985 = vmatpush.bf16.msra.mxu0 0
      %1986 = vmatpush.bf16.msra.mxu0 0
      %1987 = vmatpush.bf16.msra.mxu0 0
      %1988 = vmatpush.bf16.msra.mxu0 0
      %1989 = vmatpush.bf16.msra.mxu0 0
      %1990 = vmatpush.bf16.msra.mxu0 %v1978
      %1991 = vmatmul.bf16.gmra.mxu0 %v1981
      %v1992 = vpop.f32.mrf.mxu0
      %v1993 = vadd.f32 0.0, %v1992
      %v1994 = vpop.f32.mrf.mxu0
      %v1995 = vadd.f32 0.0, %v1994
      %1996 = vdwg.mxu0
      %v1999 = vunpack.c.l.b16 %v1666
      %v2000 = vunpack.c.l.b16 %v1667
      %v2001 = vpack.c.b16 %v2000, %v1999
      %2002 = vrot.lane.b32.xlu0 %v1150, 64
      %v2003 = vpop.permute.xlu0 %2002
      %v2006 = vsel %vm1287, %v2001, 0
      %2008 = vmatpush.bf16.msra.mxu0 0
      %2009 = vmatpush.bf16.msra.mxu0 0
      %2010 = vmatpush.bf16.msra.mxu0 0
      %2011 = vmatpush.bf16.msra.mxu0 0
      %2012 = vmatpush.bf16.msra.mxu0 0
      %2013 = vmatpush.bf16.msra.mxu0 0
      %2014 = vmatpush.bf16.msra.mxu0 0
      %2015 = vmatpush.bf16.msra.mxu0 %v2003
      %2016 = vmatmul.bf16.gmra.mxu0 %v2006
      %v2017 = vpop.f32.mrf.mxu0
      %v2018 = vadd.f32 0.0, %v2017
      %v2019 = vpop.f32.mrf.mxu0
      %v2020 = vadd.f32 0.0, %v2019
      %2021 = vdwg.mxu0
      %v2024 = vunpack.c.l.b16 %v1668
      %v2025 = vunpack.c.l.b16 %v1669
      %v2026 = vpack.c.b16 %v2025, %v2024
      %2027 = vrot.lane.b32.xlu0 %v1175, 64
      %v2028 = vpop.permute.xlu0 %2027
      %v2031 = vsel %vm1287, %v2026, 0
      %2033 = vmatpush.bf16.msra.mxu0 0
      %2034 = vmatpush.bf16.msra.mxu0 0
      %2035 = vmatpush.bf16.msra.mxu0 0
      %2036 = vmatpush.bf16.msra.mxu0 0
      %2037 = vmatpush.bf16.msra.mxu0 0
      %2038 = vmatpush.bf16.msra.mxu0 0
      %2039 = vmatpush.bf16.msra.mxu0 0
      %2040 = vmatpush.bf16.msra.mxu0 %v2028
      %2041 = vmatmul.bf16.gmra.mxu0 %v2031
      %v2042 = vpop.f32.mrf.mxu0
      %v2043 = vadd.f32 0.0, %v2042
      %v2044 = vpop.f32.mrf.mxu0
      %v2045 = vadd.f32 0.0, %v2044
      %2046 = vdwg.mxu0
      %v2049 = vunpack.c.l.b16 %v1670
      %v2050 = vunpack.c.l.b16 %v1671
      %v2051 = vpack.c.b16 %v2050, %v2049
      %2052 = vrot.lane.b32.xlu0 %v1200, 64
      %v2053 = vpop.permute.xlu0 %2052
      %v2056 = vsel %vm1287, %v2051, 0
      %2058 = vmatpush.bf16.msra.mxu0 0
      %2059 = vmatpush.bf16.msra.mxu0 0
      %2060 = vmatpush.bf16.msra.mxu0 0
      %2061 = vmatpush.bf16.msra.mxu0 0
      %2062 = vmatpush.bf16.msra.mxu0 0
      %2063 = vmatpush.bf16.msra.mxu0 0
      %2064 = vmatpush.bf16.msra.mxu0 0
      %2065 = vmatpush.bf16.msra.mxu0 %v2053
      %2066 = vmatmul.bf16.gmra.mxu0 %v2056
      %v2067 = vpop.f32.mrf.mxu0
      %v2068 = vadd.f32 0.0, %v2067
      %v2069 = vpop.f32.mrf.mxu0
      %v2070 = vadd.f32 0.0, %v2069
      %2071 = vdwg.mxu0
      %2080 = vrot.lane.b32.xlu0 %v1793, 8
      %v2081 = vpop.permute.xlu0 %2080
      %2082 = vrot.lane.b32.xlu0 %v1795, 8
      %v2083 = vpop.permute.xlu0 %2082
      %2084 = vrot.lane.b32.xlu0 %v1818, 8
      %v2085 = vpop.permute.xlu0 %2084
      %2086 = vrot.lane.b32.xlu0 %v1820, 8
      %v2087 = vpop.permute.xlu0 %2086
      %2088 = vrot.lane.b32.xlu0 %v1843, 8
      %v2089 = vpop.permute.xlu0 %2088
      %2090 = vrot.lane.b32.xlu0 %v1845, 8
      %v2091 = vpop.permute.xlu0 %2090
      %2092 = vrot.lane.b32.xlu0 %v1868, 8
      %v2093 = vpop.permute.xlu0 %2092
      %2094 = vrot.lane.b32.xlu0 %v1870, 8
      %v2095 = vpop.permute.xlu0 %2094
      %2112 = vrot.lane.b32.xlu0 %v1893, 16
      %v2113 = vpop.permute.xlu0 %2112
      %2114 = vrot.lane.b32.xlu0 %v1895, 16
      %v2115 = vpop.permute.xlu0 %2114
      %2116 = vrot.lane.b32.xlu0 %v1918, 16
      %v2117 = vpop.permute.xlu0 %2116
      %2118 = vrot.lane.b32.xlu0 %v1920, 16
      %v2119 = vpop.permute.xlu0 %2118
      %2120 = vrot.lane.b32.xlu0 %v1943, 16
      %v2121 = vpop.permute.xlu0 %2120
      %2122 = vrot.lane.b32.xlu0 %v1945, 16
      %v2123 = vpop.permute.xlu0 %2122
      %2124 = vrot.lane.b32.xlu0 %v1968, 16
      %v2125 = vpop.permute.xlu0 %2124
      %2126 = vrot.lane.b32.xlu0 %v1970, 16
      %v2127 = vpop.permute.xlu0 %2126
      %2144 = vrot.lane.b32.xlu0 %v1993, 24
      %v2145 = vpop.permute.xlu0 %2144
      %2146 = vrot.lane.b32.xlu0 %v1995, 24
      %v2147 = vpop.permute.xlu0 %2146
      %2148 = vrot.lane.b32.xlu0 %v2018, 24
      %v2149 = vpop.permute.xlu0 %2148
      %2150 = vrot.lane.b32.xlu0 %v2020, 24
      %v2151 = vpop.permute.xlu0 %2150
      %2152 = vrot.lane.b32.xlu0 %v2043, 24
      %v2153 = vpop.permute.xlu0 %2152
      %2154 = vrot.lane.b32.xlu0 %v2045, 24
      %v2155 = vpop.permute.xlu0 %2154
      %2156 = vrot.lane.b32.xlu0 %v2068, 24
      %v2157 = vpop.permute.xlu0 %2156
      %2158 = vrot.lane.b32.xlu0 %v2070, 24
      %v2159 = vpop.permute.xlu0 %2158
      %v2168 = vsel %vm827, %v1693, %v2081
      %v2169 = vsel %vm827, %v1695, %v2083
      %v2170 = vsel %vm827, %v1718, %v2085
      %v2171 = vsel %vm827, %v1720, %v2087
      %v2172 = vsel %vm827, %v1743, %v2089
      %v2173 = vsel %vm827, %v1745, %v2091
      %v2174 = vsel %vm827, %v1768, %v2093
      %v2175 = vsel %vm827, %v1770, %v2095
      %v2176 = vsel %vm1287, %v2168, %v2113
      %v2177 = vsel %vm1287, %v2169, %v2115
      %v2178 = vsel %vm1287, %v2170, %v2117
      %v2179 = vsel %vm1287, %v2171, %v2119
      %v2180 = vsel %vm1287, %v2172, %v2121
      %v2181 = vsel %vm1287, %v2173, %v2123
      %v2182 = vsel %vm1287, %v2174, %v2125
      %v2183 = vsel %vm1287, %v2175, %v2127
      %vm2184 = vcmask 195584
      %v2185 = vsel %vm2184, %v2176, %v2145
      %v2186 = vsel %vm2184, %v2177, %v2147
      %v2187 = vsel %vm2184, %v2178, %v2149
      %v2188 = vsel %vm2184, %v2179, %v2151
      %v2189 = vsel %vm2184, %v2180, %v2153
      %v2190 = vsel %vm2184, %v2181, %v2155
      %v2191 = vsel %vm2184, %v2182, %v2157
      %v2192 = vsel %vm2184, %v2183, %v2159
      %v2193 = vpack.c.bf16 %v2186, %v2185
      %v2194 = vpack.c.bf16 %v2188, %v2187
      %v2195 = vpack.c.bf16 %v2190, %v2189
      %v2196 = vpack.c.bf16 %v2192, %v2191
      %v2197 = vld [vmem:[%s6] sm:$0xf]
      %v2198 = vld [vmem:[%s6 + $0x4] sm:$0xf]
      %v2199 = vld [vmem:[%s6 + $0x8] sm:$0xf]
      %v2200 = vld [vmem:[%s6 + $0xc] sm:$0xf]
      %v2201 = vld [vmem:[%s7] sm:$0x1]
      %v2203 = vperm.slane %v2201, 0
      %v2209 = vunpack.c.l.b16 %v2197
      %v2210 = vunpack.c.l.b16 %v2198
      %v2211 = vunpack.c.l.b16 %v2199
      %v2212 = vunpack.c.l.b16 %v2200
      %v2213 = vpack.c.b16 %v2210, %v2209
      %v2214 = vpack.c.b16 %v2212, %v2211
      %v2218 = vsel %vm485, %v2193, 0
      %v2221 = vsel %vm485, %v2194, 0
      %v2224 = vsel %vm485, %v2195, 0
      %v2227 = vsel %vm485, %v2196, 0
      %2229 = vmatpush.bf16.msra.mxu0 0
      %2230 = vmatpush.bf16.msra.mxu0 0
      %2231 = vmatpush.bf16.msra.mxu0 0
      %2232 = vmatpush.bf16.msra.mxu0 0
      %2233 = vmatpush.bf16.msra.mxu0 0
      %2234 = vmatpush.bf16.msra.mxu0 0
      %2235 = vmatpush.bf16.msra.mxu0 %v2214
      %2236 = vmatpush.bf16.msra.mxu0 %v2213
      %2237 = vmatmul.bf16.gmra.mxu0 %v2218
      %v2238 = vpop.f32.mrf.mxu0
      %v2239 = vadd.f32 %v2203, %v2238
      %v2240 = vpop.f32.mrf.mxu0
      %v2241 = vadd.f32 %v2203, %v2240
      %2242 = vmatmul.bf16.gmra.mxu0 %v2221
      %v2243 = vpop.f32.mrf.mxu0
      %v2244 = vadd.f32 %v2203, %v2243
      %v2245 = vpop.f32.mrf.mxu0
      %v2246 = vadd.f32 %v2203, %v2245
      %2247 = vmatmul.bf16.gmra.mxu0 %v2224
      %v2248 = vpop.f32.mrf.mxu0
      %v2249 = vadd.f32 %v2203, %v2248
      %v2250 = vpop.f32.mrf.mxu0
      %v2251 = vadd.f32 %v2203, %v2250
      %2252 = vmatmul.bf16.gmra.mxu0 %v2227
      %v2253 = vpop.f32.mrf.mxu0
      %v2254 = vadd.f32 %v2203, %v2253
      %v2255 = vpop.f32.mrf.mxu0
      %v2256 = vadd.f32 %v2203, %v2255
      %2257 = vdwg.mxu0
      %v2258 = vadd.f32 %v477, %v2239
      %v2259 = vadd.f32 %v478, %v2241
      %v2260 = vadd.f32 %v479, %v2244
      %v2261 = vadd.f32 %v480, %v2246
      %v2262 = vadd.f32 %v481, %v2249
      %v2263 = vadd.f32 %v482, %v2251
      %v2264 = vadd.f32 %v483, %v2254
      %v2265 = vadd.f32 %v484, %v2256
      %v2266 = vsel %vm485, %v2258, 0.0
      %2267 = vadd.xlane.f32.xlu0 %v2266
      %v2268 = vpop.xlane.xlu0 %2267
      %v2269 = vsel %vm485, %v2259, 0.0
      %2270 = vadd.xlane.f32.xlu0 %v2269
      %v2271 = vpop.xlane.xlu0 %2270
      %v2272 = vsel %vm485, %v2260, 0.0
      %2273 = vadd.xlane.f32.xlu0 %v2272
      %v2274 = vpop.xlane.xlu0 %2273
      %v2275 = vsel %vm485, %v2261, 0.0
      %2276 = vadd.xlane.f32.xlu0 %v2275
      %v2277 = vpop.xlane.xlu0 %2276
      %v2278 = vsel %vm485, %v2262, 0.0
      %2279 = vadd.xlane.f32.xlu0 %v2278
      %v2280 = vpop.xlane.xlu0 %2279
      %v2281 = vsel %vm485, %v2263, 0.0
      %2282 = vadd.xlane.f32.xlu0 %v2281
      %v2283 = vpop.xlane.xlu0 %2282
      %v2284 = vsel %vm485, %v2264, 0.0
      %2285 = vadd.xlane.f32.xlu0 %v2284
      %v2286 = vpop.xlane.xlu0 %2285
      %v2287 = vsel %vm485, %v2265, 0.0
      %2288 = vadd.xlane.f32.xlu0 %v2287
      %v2289 = vpop.xlane.xlu0 %2288
      %v2290 = vmul.f32 %v2268, %v516
      %v2291 = vmul.f32 %v2271, %v516
      %v2292 = vmul.f32 %v2274, %v516
      %v2293 = vmul.f32 %v2277, %v516
      %v2294 = vmul.f32 %v2280, %v516
      %v2295 = vmul.f32 %v2283, %v516
      %v2296 = vmul.f32 %v2286, %v516
      %v2297 = vmul.f32 %v2289, %v516
      %v2298 = vsub.f32 %v2258, %v2290
      %v2299 = vsub.f32 %v2259, %v2291
      %v2300 = vsub.f32 %v2260, %v2292
      %v2301 = vsub.f32 %v2261, %v2293
      %v2302 = vsub.f32 %v2262, %v2294
      %v2303 = vsub.f32 %v2263, %v2295
      %v2304 = vsub.f32 %v2264, %v2296
      %v2305 = vsub.f32 %v2265, %v2297
      %v2306 = vmul.f32 %v2298, %v2298
      %v2307 = vmul.f32 %v2299, %v2299
      %v2308 = vmul.f32 %v2300, %v2300
      %v2309 = vmul.f32 %v2301, %v2301
      %v2310 = vmul.f32 %v2302, %v2302
      %v2311 = vmul.f32 %v2303, %v2303
      %v2312 = vmul.f32 %v2304, %v2304
      %v2313 = vmul.f32 %v2305, %v2305
      %v2314 = vsel %vm485, %v2306, 0.0
      %2315 = vadd.xlane.f32.xlu0 %v2314
      %v2316 = vpop.xlane.xlu0 %2315
      %v2317 = vsel %vm485, %v2307, 0.0
      %2318 = vadd.xlane.f32.xlu0 %v2317
      %v2319 = vpop.xlane.xlu0 %2318
      %v2320 = vsel %vm485, %v2308, 0.0
      %2321 = vadd.xlane.f32.xlu0 %v2320
      %v2322 = vpop.xlane.xlu0 %2321
      %v2323 = vsel %vm485, %v2309, 0.0
      %2324 = vadd.xlane.f32.xlu0 %v2323
      %v2325 = vpop.xlane.xlu0 %2324
      %v2326 = vsel %vm485, %v2310, 0.0
      %2327 = vadd.xlane.f32.xlu0 %v2326
      %v2328 = vpop.xlane.xlu0 %2327
      %v2329 = vsel %vm485, %v2311, 0.0
      %2330 = vadd.xlane.f32.xlu0 %v2329
      %v2331 = vpop.xlane.xlu0 %2330
      %v2332 = vsel %vm485, %v2312, 0.0
      %2333 = vadd.xlane.f32.xlu0 %v2332
      %v2334 = vpop.xlane.xlu0 %2333
      %v2335 = vsel %vm485, %v2313, 0.0
      %2336 = vadd.xlane.f32.xlu0 %v2335
      %v2337 = vpop.xlane.xlu0 %2336
      %v2338 = vmul.f32 %v2316, %v516
      %v2339 = vmul.f32 %v2319, %v516
      %v2340 = vmul.f32 %v2322, %v516
      %v2341 = vmul.f32 %v2325, %v516
      %v2342 = vmul.f32 %v2328, %v516
      %v2343 = vmul.f32 %v2331, %v516
      %v2344 = vmul.f32 %v2334, %v516
      %v2345 = vmul.f32 %v2337, %v516
      %v2346 = vadd.f32 %v2338, 1e-05
      %v2347 = vadd.f32 %v2339, 1e-05
      %v2348 = vadd.f32 %v2340, 1e-05
      %v2349 = vadd.f32 %v2341, 1e-05
      %v2350 = vadd.f32 %v2342, 1e-05
      %v2351 = vadd.f32 %v2343, 1e-05
      %v2352 = vadd.f32 %v2344, 1e-05
      %v2353 = vadd.f32 %v2345, 1e-05
      %v2354 = vrsqrt.pop %v2346
      %v2355 = vmul.f32 %v2354, %v2346
      %v2356 = vmul.f32 %v2355, %v2354
      %v2357 = vmul.f32 0.5, %v2356
      %v2358 = vsub.f32 1.5, %v2357
      %v2359 = vmul.f32 %v2354, %v2358
      %vm2360 = vweird.f32 %v2346
      %vm2361 = vweird.f32 %v2354
      %vm2362 = vmor %vm2360, %vm2361
      %v2363 = vsel %vm2362, %v2354, %v2359
      %v2364 = vrsqrt.pop %v2347
      %v2365 = vmul.f32 %v2364, %v2347
      %v2366 = vmul.f32 %v2365, %v2364
      %v2367 = vmul.f32 0.5, %v2366
      %v2368 = vsub.f32 1.5, %v2367
      %v2369 = vmul.f32 %v2364, %v2368
      %vm2370 = vweird.f32 %v2347
      %vm2371 = vweird.f32 %v2364
      %vm2372 = vmor %vm2370, %vm2371
      %v2373 = vsel %vm2372, %v2364, %v2369
      %v2374 = vrsqrt.pop %v2348
      %v2375 = vmul.f32 %v2374, %v2348
      %v2376 = vmul.f32 %v2375, %v2374
      %v2377 = vmul.f32 0.5, %v2376
      %v2378 = vsub.f32 1.5, %v2377
      %v2379 = vmul.f32 %v2374, %v2378
      %vm2380 = vweird.f32 %v2348
      %vm2381 = vweird.f32 %v2374
      %vm2382 = vmor %vm2380, %vm2381
      %v2383 = vsel %vm2382, %v2374, %v2379
      %v2384 = vrsqrt.pop %v2349
      %v2385 = vmul.f32 %v2384, %v2349
      %v2386 = vmul.f32 %v2385, %v2384
      %v2387 = vmul.f32 0.5, %v2386
      %v2388 = vsub.f32 1.5, %v2387
      %v2389 = vmul.f32 %v2384, %v2388
      %vm2390 = vweird.f32 %v2349
      %vm2391 = vweird.f32 %v2384
      %vm2392 = vmor %vm2390, %vm2391
      %v2393 = vsel %vm2392, %v2384, %v2389
      %v2394 = vrsqrt.pop %v2350
      %v2395 = vmul.f32 %v2394, %v2350
      %v2396 = vmul.f32 %v2395, %v2394
      %v2397 = vmul.f32 0.5, %v2396
      %v2398 = vsub.f32 1.5, %v2397
      %v2399 = vmul.f32 %v2394, %v2398
      %vm2400 = vweird.f32 %v2350
      %vm2401 = vweird.f32 %v2394
      %vm2402 = vmor %vm2400, %vm2401
      %v2403 = vsel %vm2402, %v2394, %v2399
      %v2404 = vrsqrt.pop %v2351
      %v2405 = vmul.f32 %v2404, %v2351
      %v2406 = vmul.f32 %v2405, %v2404
      %v2407 = vmul.f32 0.5, %v2406
      %v2408 = vsub.f32 1.5, %v2407
      %v2409 = vmul.f32 %v2404, %v2408
      %vm2410 = vweird.f32 %v2351
      %vm2411 = vweird.f32 %v2404
      %vm2412 = vmor %vm2410, %vm2411
      %v2413 = vsel %vm2412, %v2404, %v2409
      %v2414 = vrsqrt.pop %v2352
      %v2415 = vmul.f32 %v2414, %v2352
      %v2416 = vmul.f32 %v2415, %v2414
      %v2417 = vmul.f32 0.5, %v2416
      %v2418 = vsub.f32 1.5, %v2417
      %v2419 = vmul.f32 %v2414, %v2418
      %vm2420 = vweird.f32 %v2352
      %vm2421 = vweird.f32 %v2414
      %vm2422 = vmor %vm2420, %vm2421
      %v2423 = vsel %vm2422, %v2414, %v2419
      %v2424 = vrsqrt.pop %v2353
      %v2425 = vmul.f32 %v2424, %v2353
      %v2426 = vmul.f32 %v2425, %v2424
      %v2427 = vmul.f32 0.5, %v2426
      %v2428 = vsub.f32 1.5, %v2427
      %v2429 = vmul.f32 %v2424, %v2428
      %vm2430 = vweird.f32 %v2353
      %vm2431 = vweird.f32 %v2424
      %vm2432 = vmor %vm2430, %vm2431
      %v2433 = vsel %vm2432, %v2424, %v2429
      %v2434 = vmul.f32 %v2298, %v2363
      %v2435 = vmul.f32 %v2299, %v2373
      %v2436 = vmul.f32 %v2300, %v2383
      %v2437 = vmul.f32 %v2301, %v2393
      %v2438 = vmul.f32 %v2302, %v2403
      %v2439 = vmul.f32 %v2303, %v2413
      %v2440 = vmul.f32 %v2304, %v2423
      %v2441 = vmul.f32 %v2305, %v2433
      %v2442 = vld [vmem:[%s8] sm:$0x1]
      %v2444 = vperm.slane %v2442, 0
      %v2446 = vmul.f32 %v2434, %v2444
      %v2447 = vmul.f32 %v2435, %v2444
      %v2448 = vmul.f32 %v2436, %v2444
      %v2449 = vmul.f32 %v2437, %v2444
      %v2450 = vmul.f32 %v2438, %v2444
      %v2451 = vmul.f32 %v2439, %v2444
      %v2452 = vmul.f32 %v2440, %v2444
      %v2453 = vmul.f32 %v2441, %v2444
      %v2454 = vld [vmem:[%s9] sm:$0x1]
      %v2456 = vperm.slane %v2454, 0
      %v2458 = vadd.f32 %v2446, %v2456
      %v2459 = vadd.f32 %v2447, %v2456
      %v2460 = vadd.f32 %v2448, %v2456
      %v2461 = vadd.f32 %v2449, %v2456
      %v2462 = vadd.f32 %v2450, %v2456
      %v2463 = vadd.f32 %v2451, %v2456
      %v2464 = vadd.f32 %v2452, %v2456
      %v2465 = vadd.f32 %v2453, %v2456
      %v2466 = vpack.c.bf16 %v2459, %v2458
      %v2467 = vpack.c.bf16 %v2461, %v2460
      %v2468 = vpack.c.bf16 %v2463, %v2462
      %v2469 = vpack.c.bf16 %v2465, %v2464
      %v2470 = vld [vmem:[%s10] sm:$0xf]
      %v2471 = vld [vmem:[%s10 + $0x4] sm:$0xf]
      %v2472 = vld [vmem:[%s10 + $0x8] sm:$0xf]
      %v2473 = vld [vmem:[%s10 + $0xc] sm:$0xf]
      %v2474 = vld [vmem:[%s11] sm:$0x1]
      %v2476 = vperm.slane %v2474, 0
      %v2482 = vunpack.c.l.b16 %v2470
      %v2483 = vunpack.c.l.b16 %v2471
      %v2484 = vunpack.c.l.b16 %v2472
      %v2485 = vunpack.c.l.b16 %v2473
      %v2486 = vpack.c.b16 %v2483, %v2482
      %v2487 = vpack.c.b16 %v2485, %v2484
      %v2491 = vsel %vm485, %v2466, 0
      %v2494 = vsel %vm485, %v2467, 0
      %v2497 = vsel %vm485, %v2468, 0
      %v2500 = vsel %vm485, %v2469, 0
      %2502 = vmatpush.bf16.msra.mxu0 0
      %2503 = vmatpush.bf16.msra.mxu0 0
      %2504 = vmatpush.bf16.msra.mxu0 0
      %2505 = vmatpush.bf16.msra.mxu0 0
      %2506 = vmatpush.bf16.msra.mxu0 0
      %2507 = vmatpush.bf16.msra.mxu0 0
      %2508 = vmatpush.bf16.msra.mxu0 %v2487
      %2509 = vmatpush.bf16.msra.mxu0 %v2486
      %2510 = vmatmul.bf16.gmra.mxu0 %v2491
      %v2511 = vpop.f32.mrf.mxu0
      %v2512 = vadd.f32 %v2476, %v2511
      %v2513 = vpop.f32.mrf.mxu0
      %v2514 = vadd.f32 %v2476, %v2513
      %2515 = vmatmul.bf16.gmra.mxu0 %v2494
      %v2516 = vpop.f32.mrf.mxu0
      %v2517 = vadd.f32 %v2476, %v2516
      %v2518 = vpop.f32.mrf.mxu0
      %v2519 = vadd.f32 %v2476, %v2518
      %2520 = vmatmul.bf16.gmra.mxu0 %v2497
      %v2521 = vpop.f32.mrf.mxu0
      %v2522 = vadd.f32 %v2476, %v2521
      %v2523 = vpop.f32.mrf.mxu0
      %v2524 = vadd.f32 %v2476, %v2523
      %2525 = vmatmul.bf16.gmra.mxu0 %v2500
      %v2526 = vpop.f32.mrf.mxu0
      %v2527 = vadd.f32 %v2476, %v2526
      %v2528 = vpop.f32.mrf.mxu0
      %v2529 = vadd.f32 %v2476, %v2528
      %2530 = vdwg.mxu0
      %v2531 = vmul.f32 %v2512, %v2512
      %v2532 = vmul.f32 %v2514, %v2514
      %v2533 = vmul.f32 %v2517, %v2517
      %v2534 = vmul.f32 %v2519, %v2519
      %v2535 = vmul.f32 %v2522, %v2522
      %v2536 = vmul.f32 %v2524, %v2524
      %v2537 = vmul.f32 %v2527, %v2527
      %v2538 = vmul.f32 %v2529, %v2529
      %v2539 = vmul.f32 %v2512, %v2531
      %v2540 = vmul.f32 %v2514, %v2532
      %v2541 = vmul.f32 %v2517, %v2533
      %v2542 = vmul.f32 %v2519, %v2534
      %v2543 = vmul.f32 %v2522, %v2535
      %v2544 = vmul.f32 %v2524, %v2536
      %v2545 = vmul.f32 %v2527, %v2537
      %v2546 = vmul.f32 %v2529, %v2538
      %v2547 = vmul.f32 %v2539, 0.044715
      %v2548 = vmul.f32 %v2540, 0.044715
      %v2549 = vmul.f32 %v2541, 0.044715
      %v2550 = vmul.f32 %v2542, 0.044715
      %v2551 = vmul.f32 %v2543, 0.044715
      %v2552 = vmul.f32 %v2544, 0.044715
      %v2553 = vmul.f32 %v2545, 0.044715
      %v2554 = vmul.f32 %v2546, 0.044715
      %v2555 = vadd.f32 %v2512, %v2547
      %v2556 = vadd.f32 %v2514, %v2548
      %v2557 = vadd.f32 %v2517, %v2549
      %v2558 = vadd.f32 %v2519, %v2550
      %v2559 = vadd.f32 %v2522, %v2551
      %v2560 = vadd.f32 %v2524, %v2552
      %v2561 = vadd.f32 %v2527, %v2553
      %v2562 = vadd.f32 %v2529, %v2554
      %v2563 = vmul.f32 %v2555, 0.7978846
      %v2564 = vmul.f32 %v2556, 0.7978846
      %v2565 = vmul.f32 %v2557, 0.7978846
      %v2566 = vmul.f32 %v2558, 0.7978846
      %v2567 = vmul.f32 %v2559, 0.7978846
      %v2568 = vmul.f32 %v2560, 0.7978846
      %v2569 = vmul.f32 %v2561, 0.7978846
      %v2570 = vmul.f32 %v2562, 0.7978846
      %v2571 = vtanh.pop %v2563
      %v2572 = vtanh.pop %v2564
      %v2573 = vtanh.pop %v2565
      %v2574 = vtanh.pop %v2566
      %v2575 = vtanh.pop %v2567
      %v2576 = vtanh.pop %v2568
      %v2577 = vtanh.pop %v2569
      %v2578 = vtanh.pop %v2570
      %v2579 = vadd.f32 %v2571, 1.0
      %v2580 = vadd.f32 %v2572, 1.0
      %v2581 = vadd.f32 %v2573, 1.0
      %v2582 = vadd.f32 %v2574, 1.0
      %v2583 = vadd.f32 %v2575, 1.0
      %v2584 = vadd.f32 %v2576, 1.0
      %v2585 = vadd.f32 %v2577, 1.0
      %v2586 = vadd.f32 %v2578, 1.0
      %v2587 = vmul.f32 %v2579, 0.5
      %v2588 = vmul.f32 %v2580, 0.5
      %v2589 = vmul.f32 %v2581, 0.5
      %v2590 = vmul.f32 %v2582, 0.5
      %v2591 = vmul.f32 %v2583, 0.5
      %v2592 = vmul.f32 %v2584, 0.5
      %v2593 = vmul.f32 %v2585, 0.5
      %v2594 = vmul.f32 %v2586, 0.5
      %v2595 = vmul.f32 %v2512, %v2587
      %v2596 = vmul.f32 %v2514, %v2588
      %v2597 = vmul.f32 %v2517, %v2589
      %v2598 = vmul.f32 %v2519, %v2590
      %v2599 = vmul.f32 %v2522, %v2591
      %v2600 = vmul.f32 %v2524, %v2592
      %v2601 = vmul.f32 %v2527, %v2593
      %v2602 = vmul.f32 %v2529, %v2594
      %v2603 = vpack.c.bf16 %v2596, %v2595
      %v2604 = vpack.c.bf16 %v2598, %v2597
      %v2605 = vpack.c.bf16 %v2600, %v2599
      %v2606 = vpack.c.bf16 %v2602, %v2601
      %v2607 = vld [vmem:[%s12] sm:$0xf]
      %v2608 = vld [vmem:[%s12 + $0x4] sm:$0xf]
      %v2609 = vld [vmem:[%s12 + $0x8] sm:$0xf]
      %v2610 = vld [vmem:[%s12 + $0xc] sm:$0xf]
      %v2611 = vld [vmem:[%s12 + $0x10] sm:$0xf]
      %v2612 = vld [vmem:[%s12 + $0x14] sm:$0xf]
      %v2613 = vld [vmem:[%s12 + $0x18] sm:$0xf]
      %v2614 = vld [vmem:[%s12 + $0x1c] sm:$0xf]
      %v2623 = vunpack.c.l.b16 %v2607
      %v2624 = vunpack.c.l.b16 %v2608
      %v2625 = vunpack.c.l.b16 %v2609
      %v2626 = vunpack.c.l.b16 %v2610
      %v2627 = vunpack.c.l.b16 %v2611
      %v2628 = vunpack.c.l.b16 %v2612
      %v2629 = vunpack.c.l.b16 %v2613
      %v2630 = vunpack.c.l.b16 %v2614
      %v2631 = vpack.c.b16 %v2624, %v2623
      %v2632 = vpack.c.b16 %v2626, %v2625
      %v2633 = vpack.c.b16 %v2628, %v2627
      %v2634 = vpack.c.b16 %v2630, %v2629
      %vm2639 = vcmask 523264
      %v2641 = vsel %vm2639, %v2603, 0
      %v2644 = vsel %vm2639, %v2604, 0
      %v2647 = vsel %vm2639, %v2605, 0
      %v2650 = vsel %vm2639, %v2606, 0
      %2652 = vmatpush.bf16.msra.mxu0 0
      %2653 = vmatpush.bf16.msra.mxu0 0
      %2654 = vmatpush.bf16.msra.mxu0 0
      %2655 = vmatpush.bf16.msra.mxu0 0
      %2656 = vmatpush.bf16.msra.mxu0 %v2634
      %2657 = vmatpush.bf16.msra.mxu0 %v2633
      %2658 = vmatpush.bf16.msra.mxu0 %v2632
      %2659 = vmatpush.bf16.msra.mxu0 %v2631
      %2660 = vmatmul.bf16.gmra.mxu0 %v2641
      %v2661 = vpop.f32.mrf.mxu0
      %v2662 = vadd.f32 0.0, %v2661
      %v2663 = vpop.f32.mrf.mxu0
      %v2664 = vadd.f32 0.0, %v2663
      %2665 = vmatmul.bf16.gmra.mxu0 %v2644
      %v2666 = vpop.f32.mrf.mxu0
      %v2667 = vadd.f32 0.0, %v2666
      %v2668 = vpop.f32.mrf.mxu0
      %v2669 = vadd.f32 0.0, %v2668
      %2670 = vmatmul.bf16.gmra.mxu0 %v2647
      %v2671 = vpop.f32.mrf.mxu0
      %v2672 = vadd.f32 0.0, %v2671
      %v2673 = vpop.f32.mrf.mxu0
      %v2674 = vadd.f32 0.0, %v2673
      %2675 = vmatmul.bf16.gmra.mxu0 %v2650
      %v2676 = vpop.f32.mrf.mxu0
      %v2677 = vadd.f32 0.0, %v2676
      %v2678 = vpop.f32.mrf.mxu0
      %v2679 = vadd.f32 0.0, %v2678
      %2680 = vdwg.mxu0
      %v2681 = vadd.f32 %v2258, %v2662
      %v2682 = vadd.f32 %v2259, %v2664
      %v2683 = vadd.f32 %v2260, %v2667
      %v2684 = vadd.f32 %v2261, %v2669
      %v2685 = vadd.f32 %v2262, %v2672
      %v2686 = vadd.f32 %v2263, %v2674
      %v2687 = vadd.f32 %v2264, %v2677
      %v2688 = vadd.f32 %v2265, %v2679
      %v2689 = vld [vmem:[%s13] sm:$0x1]
      %v2691 = vperm.slane %v2689, 0
      %v2693 = vadd.f32 %v2681, %v2691
      %v2694 = vadd.f32 %v2682, %v2691
      %v2695 = vadd.f32 %v2683, %v2691
      %v2696 = vadd.f32 %v2684, %v2691
      %v2697 = vadd.f32 %v2685, %v2691
      %v2698 = vadd.f32 %v2686, %v2691
      %v2699 = vadd.f32 %v2687, %v2691
      %v2700 = vadd.f32 %v2688, %v2691
      %2701 = vst.msk [vmem:[%s474] sm:$0xff] %vm485, %v2693
      %2702 = vst.msk [vmem:[%s474 + $0x8] sm:$0xff] %vm485, %v2694
      %2703 = vst.msk [vmem:[%s474 + $0x10] sm:$0xff] %vm485, %v2695
      %2704 = vst.msk [vmem:[%s474 + $0x18] sm:$0xff] %vm485, %v2696
      %2705 = vst.msk [vmem:[%s474 + $0x20] sm:$0xff] %vm485, %v2697
      %2706 = vst.msk [vmem:[%s474 + $0x28] sm:$0xff] %vm485, %v2698
      %2707 = vst.msk [vmem:[%s474 + $0x30] sm:$0xff] %vm485, %v2699
      %2708 = vst.msk [vmem:[%s474 + $0x38] sm:$0xff] %vm485, %v2700
      %s2709 = smul.u32 4, %s25
      %p2710 = scmp.lt.s32.totalorder %s2709, 7
      %s2711 = scalar_select %p2710, %s2709, 7
      %s2712 = smul.addr %s2711, 2
      %s2713 = smul.addr %s2712, 8
      %s2714 = scalar_lea.vmem %s14, %s2713
      // Predicated region
      $region77: #{basic_layer_forward.2} parent=75 // pred_check
        %p2715 = pneg %p342
      $region78: #{basic_layer_forward.2} parent=75 // pred_check_branch
        %2717 = sbr.rel (%p2715) target = $region80
      $region79: #{basic_layer_forward.2} parent=75 // pred_region
        %s2718 = smul.u32 4, %s25
      $region80: #{basic_layer_forward.2} parent=75 // pred_fallthru
        _
    $region76: #{basic_layer_forward.2} parent=5 // pred_fallthru
      _
    %p2719 = scmp.le.s32.totalorder 2, %s20
    // Predicated region
    $region81: #{basic_layer_forward.2} parent=5 // pred_check
      %p2720 = pneg %p2719
    $region82: #{basic_layer_forward.2} parent=5 // pred_check_branch
      %2722 = sbr.rel (%p2720) target = $region84
    $region83: #{basic_layer_forward.2} parent=5 // pred_region
      %s2723 = ssub.s32 %s20, 2
      // Predicated region
      $region85: #{basic_layer_forward.2} parent=83 // pred_check
        %p2724 = pneg %p348
      $region86: #{basic_layer_forward.2} parent=83 // pred_check_branch
        %2726 = sbr.rel (%p2724) target = $region88
      $region87: #{basic_layer_forward.2} parent=83 // pred_region
        %s2727 = smul.u32 4, %s26
        %p2728 = scmp.lt.s32.totalorder %s2727, 7
        %s2729 = scalar_select %p2728, %s2727, 7
        %s2730 = smul.addr %s2729, 2
        %s2731 = smul.addr %s2730, 8
        %s2732 = scalar_lea.vmem %s14, %s2731
      $region88: #{basic_layer_forward.2} parent=83 // pred_fallthru
        _
    $region84: #{basic_layer_forward.2} parent=5 // pred_fallthru
      _
  $region6: #{basic_layer_forward.2} parent=0 // loop_footer
    %s24 = sadd.s32 1, %s20
  $region7: #{basic_layer_forward.2} parent=0 // loop_footer_branch
    %19 = sbr.rel target = $region3
  $region8: #{basic_layer_forward.2} parent=0 // loop_exit
    _

</llo_original>
